<compile_context>
chip_gen: v6e
topology: v6e:2x2x1
jax: 0.10.0
libtpu: 0.0.40
codegen_flags: <defaults>
</compile_context>

<pallas_src>
import functools

import jax
import jax.numpy as jnp
from jax.experimental import pallas as pl
from jax.experimental.pallas import tpu as pltpu


def _vmem():
    return pl.BlockSpec(memory_space=pltpu.MemorySpace.VMEM)


# ----------------------------------------------------------------------------
# Fused kernel: conv1 + conv2 (compact GEMMs) + LSTM cell + heads + softmax
# ----------------------------------------------------------------------------
def actor_critic_kernel(p_ref, h0_ref, c0_ref,
                        w1_ref, b1_ref, w2_ref, b2_ref,
                        wx_ref, whh_ref, bl_ref, wh_ref, bh_ref,
                        out_ref, *, hidden_size, n_actions, n_blocks, c2, b_pad):
    H = hidden_size
    A = n_actions
    S = n_blocks
    Bp = b_pad
    f32 = jnp.float32
    bf16 = jnp.bfloat16

    # conv1: compact GEMM, spatial blocks folded into M.  [S*Bp, Cin*16] @ [Cin*16, 4*C1]
    a1 = jnp.dot(p_ref[...], w1_ref[...], preferred_element_type=f32)
    a1 = jnp.maximum(a1 + b1_ref[...], 0.0)

    # conv2: [S*Bp, 4*C1] @ [4*C1, C2]
    feats = jnp.dot(a1.astype(bf16), w2_ref[...], preferred_element_type=f32)
    feats = jnp.maximum(feats + b2_ref[...], 0.0)                  # [S*Bp, C2]

    # LSTM gate pre-activations.  The feature relayout (rows (s,b) -> columns (s,c2))
    # is folded into the x-projection: accumulate one [Bp,C2]@[C2,4H] GEMM per block.
    gates = jnp.dot(h0_ref[...].astype(bf16), whh_ref[...],
                    preferred_element_type=f32)                    # [Bp, 4H]
    for s in range(S):
        blk = feats[s * Bp:(s + 1) * Bp, :].astype(bf16)           # [Bp, C2] (aligned)
        gates = gates + jnp.dot(blk, wx_ref[s], preferred_element_type=f32)
    gates = gates + bl_ref[...]

    # Full-vreg activations (EUP) + single lane-mask select; PyTorch gate order i,f,g,o.
    lane = jax.lax.broadcasted_iota(jnp.int32, gates.shape, 1)
    act = jnp.where((lane < 2 * H) | (lane >= 3 * H),
                    jax.nn.sigmoid(gates), jnp.tanh(gates))
    i_g = act[:, 0:H]
    f_g = act[:, H:2 * H]
    g_g = act[:, 2 * H:3 * H]
    o_g = act[:, 3 * H:4 * H]
    c1 = f_g * c0_ref[...] + i_g * g_g
    h1 = o_g * jnp.tanh(c1)

    # Fused critic+actor heads, weight pre-padded to 128 lanes: col 0 = value,
    # cols 1..A = actor logits, rest zero.
    hv = jnp.dot(h1.astype(bf16), wh_ref[...], preferred_element_type=f32) + bh_ref[...]
    value = hv[:, 0:1]
    logits = hv[:, 1:1 + A]
    logits = logits - jnp.max(logits, axis=1, keepdims=True)
    e = jnp.exp(logits)
    probs = e * pl.reciprocal(jnp.sum(e, axis=1, keepdims=True), approx=False)

    # Single lane-dense packed store: [ h1 | c1 | probs | value | zero pad ].
    pad_w = out_ref.shape[1] - (2 * H + A + 1)
    pieces = [h1, c1, probs, value]
    if pad_w > 0:
        pieces.append(jnp.zeros((Bp, pad_w), f32))
    out_ref[...] = jnp.concatenate(pieces, axis=1)


# ----------------------------------------------------------------------------
# Wrapper-side glue (plain JAX): space-to-depth of the input, output un-packing
# ----------------------------------------------------------------------------
def space_to_depth_sb(x, b_pad):
    """[B, C, H, W] NCHW -> [S*b_pad, C*16] super-patches, rows ordered (s, b).

    s = h2*Wo2 + w2 indexes the 4x4 input block feeding conv2 output (h2, w2); the
    64 columns are ordered (cin, pi, pj) with (pi, pj) the position inside the block."""
    B, C, Hh, Ww = x.shape
    Ho2, Wo2 = Hh // 4, Ww // 4
    S = Ho2 * Wo2
    xr = x.reshape(B, C, Ho2, 4, Wo2, 4)
    xr = xr.transpose(2, 4, 0, 1, 3, 5)            # [h2, w2, b, cin, pi, pj]
    xr = xr.reshape(S, B, C * 16)
    if b_pad > B:
        xr = jnp.pad(xr, ((0, 0), (0, b_pad - B), (0, 0)))
    return xr.reshape(S * b_pad, C * 16)


def init_params(key, input_channels, n_actions, hyper, input_hw=16):
    C1 = int(hyper['CONV1_FILTERS'])
    C2 = int(hyper['CONV2_FILTERS'])
    K = int(hyper['CONV_FILTER_SIZE'])
    stride = int(hyper['CONV_STRIDE'])
    H = int(hyper['HIDDEN_SIZE'])
    A = n_actions
    assert K == 2 and stride == 2, "fused space-to-depth layout assumes K=2, stride=2"
    S = (input_hw // 4) * (input_hw // 4)          # number of 4x4 input super-blocks
    F = C2 * S                                     # flattened feature size
    assert F == 128, "reference module hard-codes nn.LSTMCell(128, hidden_size)"
    assert 4 * H == 128 and 2 * H + A + 1 <= 128 and 1 + A <= 128

    keys = jax.random.split(key, 12)

    def u(k, shape, fan_in):
        bound = 1.0 / jnp.sqrt(float(fan_in))
        return jax.random.uniform(k, shape, jnp.float32, -bound, bound)

    # Raw PyTorch-layout parameters (same init distribution as Conv2d/LSTMCell/Linear).
    w1 = u(keys[0], (C1, input_channels, K, K), input_channels * K * K)
    b1 = u(keys[1], (C1,), input_channels * K * K)
    w2 = u(keys[2], (C2, C1, K, K), C1 * K * K)
    b2 = u(keys[3], (C2,), C1 * K * K)
    w_ih = u(keys[4], (4 * H, F), H)
    w_hh = u(keys[5], (4 * H, H), H)
    b_ih = u(keys[6], (4 * H,), H)
    b_hh = u(keys[7], (4 * H,), H)
    wc = u(keys[8], (1, H), H)
    bc = u(keys[9], (1,), H)
    wa = u(keys[10], (A, H), H)
    ba = u(keys[11], (A,), H)

    # ---- pre-arrange everything for the fused kernel (done once, at init) ----
    # conv1 compact: rows (cin, pi, pj) of a 4x4 block -> cols (dd, c1), dd = 2*di+dj
    # = the conv1 output position inside the conv2 2x2 window.  Shared across blocks.
    w1t = jnp.transpose(w1, (1, 2, 3, 0))                          # [Cin, ki, kj, C1]
    w1s = jnp.zeros((input_channels, 4, 4, 4, C1), jnp.float32)    # [cin,pi,pj,dd,c1]
    for di in range(2):
        for dj in range(2):
            w1s = w1s.at[:, 2 * di:2 * di + 2, 2 * dj:2 * dj + 2, 2 * di + dj, :].set(w1t)
    w1c = w1s.reshape(input_channels * 16, 4 * C1)                 # [Cin*16, 4*C1]
    b1c = jnp.tile(b1, 4)[None, :]                                 # [1, 4*C1]

    # conv2 compact: rows (ki, kj, c1) == (dd, c1) -> cols c2.  Shared across blocks.
    w2c = jnp.transpose(w2, (2, 3, 1, 0)).reshape(4 * C1, C2)      # [4*C1, C2]
    b2c = b2[None, :]                                              # [1, C2]

    # LSTM: per-spatial-block W_ih slabs.  wx[s, c2, :] = w_ih[:, c2*S + s] so the
    # per-block accumulated GEMMs reproduce torch's NCHW Flatten feature order.
    s_idx = jnp.arange(S)
    c_idx = jnp.arange(C2)
    perm = (c_idx[None, :] * S + s_idx[:, None]).reshape(-1)       # [F] s2d -> torch
    wx = w_ih[:, perm].T.reshape(S, C2, 4 * H)                     # [S, C2, 4H]
    whh = w_hh.T                                                   # [H, 4H]
    bl = (b_ih + b_hh)[None, :]                                    # [1, 4H]

    # Heads padded to a full 128-lane matmul result: col 0 = value, cols 1..A = logits.
    HEAD_W = 128
    wh = jnp.zeros((H, HEAD_W), jnp.float32)
    wh = wh.at[:, 0:1].set(wc.T).at[:, 1:1 + A].set(wa.T)          # [H, 128]
    bh = jnp.zeros((1, HEAD_W), jnp.float32)
    bh = bh.at[0, 0].set(bc[0]).at[0, 1:1 + A].set(ba)             # [1, 128]

    bf16 = jnp.bfloat16
    return {
        'hidden_size': H, 'n_actions': A, 'n_blocks': S, 'c2': C2,
        'w1c': w1c.astype(bf16), 'b1c': b1c,
        'w2c': w2c.astype(bf16), 'b2c': b2c,
        'wx': wx.astype(bf16), 'whh': whh.astype(bf16), 'bl': bl,
        'wh': wh.astype(bf16), 'bh': bh,
    }


def actor_critic_forward(params, x, hidden):
    """Returns (probs, value, (h1, c1)).

    probs plays the role of torch.distributions.Categorical(probs)."""
    # TODO(synk): Categorical distribution object has no Pallas equivalent; returning probs.
    h0, c0 = hidden
    B = x.shape[0]
    H = params['hidden_size']
    A = params['n_actions']
    S = params['n_blocks']
    C2 = params['c2']
    Bp = max(8, ((B + 7) // 8) * 8)                # pad batch to full sublane groups
    OUT_W = 128                                    # lane-dense packed output width

    p = space_to_depth_sb(x, Bp).astype(jnp.bfloat16)              # [S*Bp, Cin*16]
    h0p = jnp.pad(h0, ((0, Bp - B), (0, 0))) if Bp > B else h0
    c0p = jnp.pad(c0, ((0, Bp - B), (0, 0))) if Bp > B else c0

    kern = functools.partial(actor_critic_kernel, hidden_size=H, n_actions=A,
                             n_blocks=S, c2=C2, b_pad=Bp)
    packed = pl.pallas_call(
        kern,
        out_shape=jax.ShapeDtypeStruct((Bp, OUT_W), jnp.float32),
        in_specs=[_vmem()] * 12,
        out_specs=_vmem(),
    )(p, h0p, c0p,
      params['w1c'], params['b1c'], params['w2c'], params['b2c'],
      params['wx'], params['whh'], params['bl'],
      params['wh'], params['bh'])

    h1 = packed[:B, 0:H]
    c1 = packed[:B, H:2 * H]
    probs = packed[:B, 2 * H:2 * H + A]
    value = packed[:B, 2 * H + A:2 * H + A + 1]
    return probs, value, (h1, c1)


if __name__ == "__main__":
    key = jax.random.PRNGKey(0)
    pkey, xkey, hkey, ckey = jax.random.split(key, 4)

    input_channels = 4
    n_actions = 6
    hyper = {
        'CONV1_FILTERS': 8,
        'CONV2_FILTERS': 8,
        'CONV_FILTER_SIZE': 2,
        'CONV_STRIDE': 2,
        'HIDDEN_SIZE': 32,
    }
    # 16x16 input, two stride-2 k=2 convs -> 8 channels * 4 * 4 = 128 features,
    # matching nn.LSTMCell(128, hidden_size) in the reference module.
    B = 2
    x = jax.random.normal(xkey, (B, input_channels, 16, 16), jnp.float32)
    h0 = jax.random.normal(hkey, (B, hyper['HIDDEN_SIZE']), jnp.float32)
    c0 = jax.random.normal(ckey, (B, hyper['HIDDEN_SIZE']), jnp.float32)

    params = init_params(pkey, input_channels, n_actions, hyper, input_hw=16)

    fwd = jax.jit(lambda xx, hh, cc: actor_critic_forward(params, xx, (hh, cc)))
    probs, value, (h1, c1) = fwd(x, h0, c0)
    jax.block_until_ready((probs, value, h1, c1))

    assert probs.shape == (B, n_actions)
    assert value.shape == (B, 1)
    assert h1.shape == (B, hyper['HIDDEN_SIZE'])
    assert c1.shape == (B, hyper['HIDDEN_SIZE'])
    assert bool(jnp.all(jnp.isfinite(probs)) & jnp.all(jnp.isfinite(value))
                & jnp.all(jnp.isfinite(h1)) & jnp.all(jnp.isfinite(c1)))
    # exact reciprocal in the softmax -> rows sum to 1 up to f32 rounding
    assert jnp.allclose(jnp.sum(probs, axis=1), 1.0, atol=1e-3)

    print("KERNEL_OK")
</pallas_src>

<mosaic_0001>
module attributes {stable_mosaic.version = 11 : i64} {
  func.func @actor_critic_kernel(%arg0: memref<128x64xbf16, #tpu.memory_space<vmem>>, %arg1: memref<8x32xf32, #tpu.memory_space<vmem>>, %arg2: memref<8x32xf32, #tpu.memory_space<vmem>>, %arg3: memref<64x32xbf16, #tpu.memory_space<vmem>>, %arg4: memref<1x32xf32, #tpu.memory_space<vmem>>, %arg5: memref<32x8xbf16, #tpu.memory_space<vmem>>, %arg6: memref<1x8xf32, #tpu.memory_space<vmem>>, %arg7: memref<16x8x128xbf16, #tpu.memory_space<vmem>>, %arg8: memref<32x128xbf16, #tpu.memory_space<vmem>>, %arg9: memref<1x128xf32, #tpu.memory_space<vmem>>, %arg10: memref<32x128xbf16, #tpu.memory_space<vmem>>, %arg11: memref<1x128xf32, #tpu.memory_space<vmem>>, %arg12: memref<8x128xf32, #tpu.memory_space<vmem>>) attributes {dimension_semantics = [], scalar_prefetch = 0 : i64, scratch_operands = 0 : i64, tpu.core_type = #tpu.core_type<tc>} {
    %c0 = arith.constant 0 : index
    %c0_0 = arith.constant 0 : index
    %0 = vector.load %arg0[%c0, %c0_0] : memref<128x64xbf16, #tpu.memory_space<vmem>>, vector<128x64xbf16>
    %c0_1 = arith.constant 0 : index
    %c0_2 = arith.constant 0 : index
    %1 = vector.load %arg3[%c0_1, %c0_2] : memref<64x32xbf16, #tpu.memory_space<vmem>>, vector<64x32xbf16>
    %cst = arith.constant dense<0.000000e+00> : vector<128x32xf32>
    %2 = tpu.matmul %0, %1, %cst {dimension_numbers = #tpu.dot_dimension_numbers<[1], [0], [0], [1], [0, 0, 1, 1], [], []>} : vector<128x64xbf16>, vector<64x32xbf16>, vector<128x32xf32> -> vector<128x32xf32>
    %c0_3 = arith.constant 0 : index
    %c0_4 = arith.constant 0 : index
    %3 = vector.load %arg4[%c0_3, %c0_4] : memref<1x32xf32, #tpu.memory_space<vmem>>, vector<1x32xf32>
    %4 = vector.broadcast %3 : vector<1x32xf32> to vector<128x32xf32>
    %5 = arith.addf %2, %4 : vector<128x32xf32>
    %cst_5 = arith.constant 0.000000e+00 : f32
    %6 = vector.broadcast %cst_5 : f32 to vector<128x32xf32>
    %7 = arith.maximumf %5, %6 : vector<128x32xf32>
    %8 = arith.truncf %7 : vector<128x32xf32> to vector<128x32xbf16>
    %c0_6 = arith.constant 0 : index
    %c0_7 = arith.constant 0 : index
    %9 = vector.load %arg5[%c0_6, %c0_7] : memref<32x8xbf16, #tpu.memory_space<vmem>>, vector<32x8xbf16>
    %cst_8 = arith.constant dense<0.000000e+00> : vector<128x8xf32>
    %10 = tpu.matmul %8, %9, %cst_8 {dimension_numbers = #tpu.dot_dimension_numbers<[1], [0], [0], [1], [0, 0, 1, 1], [], []>} : vector<128x32xbf16>, vector<32x8xbf16>, vector<128x8xf32> -> vector<128x8xf32>
    %c0_9 = arith.constant 0 : index
    %c0_10 = arith.constant 0 : index
    %11 = vector.load %arg6[%c0_9, %c0_10] : memref<1x8xf32, #tpu.memory_space<vmem>>, vector<1x8xf32>
    %12 = vector.broadcast %11 : vector<1x8xf32> to vector<128x8xf32>
    %13 = arith.addf %10, %12 : vector<128x8xf32>
    %cst_11 = arith.constant 0.000000e+00 : f32
    %14 = vector.broadcast %cst_11 : f32 to vector<128x8xf32>
    %15 = arith.maximumf %13, %14 : vector<128x8xf32>
    %c0_12 = arith.constant 0 : index
    %c0_13 = arith.constant 0 : index
    %16 = vector.load %arg1[%c0_12, %c0_13] : memref<8x32xf32, #tpu.memory_space<vmem>>, vector<8x32xf32>
    %17 = arith.truncf %16 : vector<8x32xf32> to vector<8x32xbf16>
    %c0_14 = arith.constant 0 : index
    %c0_15 = arith.constant 0 : index
    %18 = vector.load %arg8[%c0_14, %c0_15] : memref<32x128xbf16, #tpu.memory_space<vmem>>, vector<32x128xbf16>
    %cst_16 = arith.constant dense<0.000000e+00> : vector<8x128xf32>
    %19 = tpu.matmul %17, %18, %cst_16 {dimension_numbers = #tpu.dot_dimension_numbers<[1], [0], [0], [1], [0, 0, 1, 1], [], []>} : vector<8x32xbf16>, vector<32x128xbf16>, vector<8x128xf32> -> vector<8x128xf32>
    %20 = vector.extract_strided_slice %15 {offsets = [0, 0], sizes = [8, 8], strides = [1, 1]} : vector<128x8xf32> to vector<8x8xf32>
    %21 = arith.truncf %20 : vector<8x8xf32> to vector<8x8xbf16>
    %c0_17 = arith.constant 0 : index
    %c0_18 = arith.constant 0 : index
    %c0_19 = arith.constant 0 : index
    %22 = vector.load %arg7[%c0_17, %c0_18, %c0_19] : memref<16x8x128xbf16, #tpu.memory_space<vmem>>, vector<1x8x128xbf16>
    %23 = vector.shape_cast %22 : vector<1x8x128xbf16> to vector<8x128xbf16>
    %cst_20 = arith.constant dense<0.000000e+00> : vector<8x128xf32>
    %24 = tpu.matmul %21, %23, %cst_20 {dimension_numbers = #tpu.dot_dimension_numbers<[1], [0], [0], [1], [0, 0, 1, 1], [], []>} : vector<8x8xbf16>, vector<8x128xbf16>, vector<8x128xf32> -> vector<8x128xf32>
    %25 = arith.addf %19, %24 : vector<8x128xf32>
    %26 = vector.extract_strided_slice %15 {offsets = [8, 0], sizes = [8, 8], strides = [1, 1]} : vector<128x8xf32> to vector<8x8xf32>
    %27 = arith.truncf %26 : vector<8x8xf32> to vector<8x8xbf16>
    %c1 = arith.constant 1 : index
    %c0_21 = arith.constant 0 : index
    %c0_22 = arith.constant 0 : index
    %28 = vector.load %arg7[%c1, %c0_21, %c0_22] : memref<16x8x128xbf16, #tpu.memory_space<vmem>>, vector<1x8x128xbf16>
    %29 = vector.shape_cast %28 : vector<1x8x128xbf16> to vector<8x128xbf16>
    %cst_23 = arith.constant dense<0.000000e+00> : vector<8x128xf32>
    %30 = tpu.matmul %27, %29, %cst_23 {dimension_numbers = #tpu.dot_dimension_numbers<[1], [0], [0], [1], [0, 0, 1, 1], [], []>} : vector<8x8xbf16>, vector<8x128xbf16>, vector<8x128xf32> -> vector<8x128xf32>
    %31 = arith.addf %25, %30 : vector<8x128xf32>
    %32 = vector.extract_strided_slice %15 {offsets = [16, 0], sizes = [8, 8], strides = [1, 1]} : vector<128x8xf32> to vector<8x8xf32>
    %33 = arith.truncf %32 : vector<8x8xf32> to vector<8x8xbf16>
    %c2 = arith.constant 2 : index
    %c0_24 = arith.constant 0 : index
    %c0_25 = arith.constant 0 : index
    %34 = vector.load %arg7[%c2, %c0_24, %c0_25] : memref<16x8x128xbf16, #tpu.memory_space<vmem>>, vector<1x8x128xbf16>
    %35 = vector.shape_cast %34 : vector<1x8x128xbf16> to vector<8x128xbf16>
    %cst_26 = arith.constant dense<0.000000e+00> : vector<8x128xf32>
    %36 = tpu.matmul %33, %35, %cst_26 {dimension_numbers = #tpu.dot_dimension_numbers<[1], [0], [0], [1], [0, 0, 1, 1], [], []>} : vector<8x8xbf16>, vector<8x128xbf16>, vector<8x128xf32> -> vector<8x128xf32>
    %37 = arith.addf %31, %36 : vector<8x128xf32>
    %38 = vector.extract_strided_slice %15 {offsets = [24, 0], sizes = [8, 8], strides = [1, 1]} : vector<128x8xf32> to vector<8x8xf32>
    %39 = arith.truncf %38 : vector<8x8xf32> to vector<8x8xbf16>
    %c3 = arith.constant 3 : index
    %c0_27 = arith.constant 0 : index
    %c0_28 = arith.constant 0 : index
    %40 = vector.load %arg7[%c3, %c0_27, %c0_28] : memref<16x8x128xbf16, #tpu.memory_space<vmem>>, vector<1x8x128xbf16>
    %41 = vector.shape_cast %40 : vector<1x8x128xbf16> to vector<8x128xbf16>
    %cst_29 = arith.constant dense<0.000000e+00> : vector<8x128xf32>
    %42 = tpu.matmul %39, %41, %cst_29 {dimension_numbers = #tpu.dot_dimension_numbers<[1], [0], [0], [1], [0, 0, 1, 1], [], []>} : vector<8x8xbf16>, vector<8x128xbf16>, vector<8x128xf32> -> vector<8x128xf32>
    %43 = arith.addf %37, %42 : vector<8x128xf32>
    %44 = vector.extract_strided_slice %15 {offsets = [32, 0], sizes = [8, 8], strides = [1, 1]} : vector<128x8xf32> to vector<8x8xf32>
    %45 = arith.truncf %44 : vector<8x8xf32> to vector<8x8xbf16>
    %c4 = arith.constant 4 : index
    %c0_30 = arith.constant 0 : index
    %c0_31 = arith.constant 0 : index
    %46 = vector.load %arg7[%c4, %c0_30, %c0_31] : memref<16x8x128xbf16, #tpu.memory_space<vmem>>, vector<1x8x128xbf16>
    %47 = vector.shape_cast %46 : vector<1x8x128xbf16> to vector<8x128xbf16>
    %cst_32 = arith.constant dense<0.000000e+00> : vector<8x128xf32>
    %48 = tpu.matmul %45, %47, %cst_32 {dimension_numbers = #tpu.dot_dimension_numbers<[1], [0], [0], [1], [0, 0, 1, 1], [], []>} : vector<8x8xbf16>, vector<8x128xbf16>, vector<8x128xf32> -> vector<8x128xf32>
    %49 = arith.addf %43, %48 : vector<8x128xf32>
    %50 = vector.extract_strided_slice %15 {offsets = [40, 0], sizes = [8, 8], strides = [1, 1]} : vector<128x8xf32> to vector<8x8xf32>
    %51 = arith.truncf %50 : vector<8x8xf32> to vector<8x8xbf16>
    %c5 = arith.constant 5 : index
    %c0_33 = arith.constant 0 : index
    %c0_34 = arith.constant 0 : index
    %52 = vector.load %arg7[%c5, %c0_33, %c0_34] : memref<16x8x128xbf16, #tpu.memory_space<vmem>>, vector<1x8x128xbf16>
    %53 = vector.shape_cast %52 : vector<1x8x128xbf16> to vector<8x128xbf16>
    %cst_35 = arith.constant dense<0.000000e+00> : vector<8x128xf32>
    %54 = tpu.matmul %51, %53, %cst_35 {dimension_numbers = #tpu.dot_dimension_numbers<[1], [0], [0], [1], [0, 0, 1, 1], [], []>} : vector<8x8xbf16>, vector<8x128xbf16>, vector<8x128xf32> -> vector<8x128xf32>
    %55 = arith.addf %49, %54 : vector<8x128xf32>
    %56 = vector.extract_strided_slice %15 {offsets = [48, 0], sizes = [8, 8], strides = [1, 1]} : vector<128x8xf32> to vector<8x8xf32>
    %57 = arith.truncf %56 : vector<8x8xf32> to vector<8x8xbf16>
    %c6 = arith.constant 6 : index
    %c0_36 = arith.constant 0 : index
    %c0_37 = arith.constant 0 : index
    %58 = vector.load %arg7[%c6, %c0_36, %c0_37] : memref<16x8x128xbf16, #tpu.memory_space<vmem>>, vector<1x8x128xbf16>
    %59 = vector.shape_cast %58 : vector<1x8x128xbf16> to vector<8x128xbf16>
    %cst_38 = arith.constant dense<0.000000e+00> : vector<8x128xf32>
    %60 = tpu.matmul %57, %59, %cst_38 {dimension_numbers = #tpu.dot_dimension_numbers<[1], [0], [0], [1], [0, 0, 1, 1], [], []>} : vector<8x8xbf16>, vector<8x128xbf16>, vector<8x128xf32> -> vector<8x128xf32>
    %61 = arith.addf %55, %60 : vector<8x128xf32>
    %62 = vector.extract_strided_slice %15 {offsets = [56, 0], sizes = [8, 8], strides = [1, 1]} : vector<128x8xf32> to vector<8x8xf32>
    %63 = arith.truncf %62 : vector<8x8xf32> to vector<8x8xbf16>
    %c7 = arith.constant 7 : index
    %c0_39 = arith.constant 0 : index
    %c0_40 = arith.constant 0 : index
    %64 = vector.load %arg7[%c7, %c0_39, %c0_40] : memref<16x8x128xbf16, #tpu.memory_space<vmem>>, vector<1x8x128xbf16>
    %65 = vector.shape_cast %64 : vector<1x8x128xbf16> to vector<8x128xbf16>
    %cst_41 = arith.constant dense<0.000000e+00> : vector<8x128xf32>
    %66 = tpu.matmul %63, %65, %cst_41 {dimension_numbers = #tpu.dot_dimension_numbers<[1], [0], [0], [1], [0, 0, 1, 1], [], []>} : vector<8x8xbf16>, vector<8x128xbf16>, vector<8x128xf32> -> vector<8x128xf32>
    %67 = arith.addf %61, %66 : vector<8x128xf32>
    %68 = vector.extract_strided_slice %15 {offsets = [64, 0], sizes = [8, 8], strides = [1, 1]} : vector<128x8xf32> to vector<8x8xf32>
    %69 = arith.truncf %68 : vector<8x8xf32> to vector<8x8xbf16>
    %c8 = arith.constant 8 : index
    %c0_42 = arith.constant 0 : index
    %c0_43 = arith.constant 0 : index
    %70 = vector.load %arg7[%c8, %c0_42, %c0_43] : memref<16x8x128xbf16, #tpu.memory_space<vmem>>, vector<1x8x128xbf16>
    %71 = vector.shape_cast %70 : vector<1x8x128xbf16> to vector<8x128xbf16>
    %cst_44 = arith.constant dense<0.000000e+00> : vector<8x128xf32>
    %72 = tpu.matmul %69, %71, %cst_44 {dimension_numbers = #tpu.dot_dimension_numbers<[1], [0], [0], [1], [0, 0, 1, 1], [], []>} : vector<8x8xbf16>, vector<8x128xbf16>, vector<8x128xf32> -> vector<8x128xf32>
    %73 = arith.addf %67, %72 : vector<8x128xf32>
    %74 = vector.extract_strided_slice %15 {offsets = [72, 0], sizes = [8, 8], strides = [1, 1]} : vector<128x8xf32> to vector<8x8xf32>
    %75 = arith.truncf %74 : vector<8x8xf32> to vector<8x8xbf16>
    %c9 = arith.constant 9 : index
    %c0_45 = arith.constant 0 : index
    %c0_46 = arith.constant 0 : index
    %76 = vector.load %arg7[%c9, %c0_45, %c0_46] : memref<16x8x128xbf16, #tpu.memory_space<vmem>>, vector<1x8x128xbf16>
    %77 = vector.shape_cast %76 : vector<1x8x128xbf16> to vector<8x128xbf16>
    %cst_47 = arith.constant dense<0.000000e+00> : vector<8x128xf32>
    %78 = tpu.matmul %75, %77, %cst_47 {dimension_numbers = #tpu.dot_dimension_numbers<[1], [0], [0], [1], [0, 0, 1, 1], [], []>} : vector<8x8xbf16>, vector<8x128xbf16>, vector<8x128xf32> -> vector<8x128xf32>
    %79 = arith.addf %73, %78 : vector<8x128xf32>
    %80 = vector.extract_strided_slice %15 {offsets = [80, 0], sizes = [8, 8], strides = [1, 1]} : vector<128x8xf32> to vector<8x8xf32>
    %81 = arith.truncf %80 : vector<8x8xf32> to vector<8x8xbf16>
    %c10 = arith.constant 10 : index
    %c0_48 = arith.constant 0 : index
    %c0_49 = arith.constant 0 : index
    %82 = vector.load %arg7[%c10, %c0_48, %c0_49] : memref<16x8x128xbf16, #tpu.memory_space<vmem>>, vector<1x8x128xbf16>
    %83 = vector.shape_cast %82 : vector<1x8x128xbf16> to vector<8x128xbf16>
    %cst_50 = arith.constant dense<0.000000e+00> : vector<8x128xf32>
    %84 = tpu.matmul %81, %83, %cst_50 {dimension_numbers = #tpu.dot_dimension_numbers<[1], [0], [0], [1], [0, 0, 1, 1], [], []>} : vector<8x8xbf16>, vector<8x128xbf16>, vector<8x128xf32> -> vector<8x128xf32>
    %85 = arith.addf %79, %84 : vector<8x128xf32>
    %86 = vector.extract_strided_slice %15 {offsets = [88, 0], sizes = [8, 8], strides = [1, 1]} : vector<128x8xf32> to vector<8x8xf32>
    %87 = arith.truncf %86 : vector<8x8xf32> to vector<8x8xbf16>
    %c11 = arith.constant 11 : index
    %c0_51 = arith.constant 0 : index
    %c0_52 = arith.constant 0 : index
    %88 = vector.load %arg7[%c11, %c0_51, %c0_52] : memref<16x8x128xbf16, #tpu.memory_space<vmem>>, vector<1x8x128xbf16>
    %89 = vector.shape_cast %88 : vector<1x8x128xbf16> to vector<8x128xbf16>
    %cst_53 = arith.constant dense<0.000000e+00> : vector<8x128xf32>
    %90 = tpu.matmul %87, %89, %cst_53 {dimension_numbers = #tpu.dot_dimension_numbers<[1], [0], [0], [1], [0, 0, 1, 1], [], []>} : vector<8x8xbf16>, vector<8x128xbf16>, vector<8x128xf32> -> vector<8x128xf32>
    %91 = arith.addf %85, %90 : vector<8x128xf32>
    %92 = vector.extract_strided_slice %15 {offsets = [96, 0], sizes = [8, 8], strides = [1, 1]} : vector<128x8xf32> to vector<8x8xf32>
    %93 = arith.truncf %92 : vector<8x8xf32> to vector<8x8xbf16>
    %c12 = arith.constant 12 : index
    %c0_54 = arith.constant 0 : index
    %c0_55 = arith.constant 0 : index
    %94 = vector.load %arg7[%c12, %c0_54, %c0_55] : memref<16x8x128xbf16, #tpu.memory_space<vmem>>, vector<1x8x128xbf16>
    %95 = vector.shape_cast %94 : vector<1x8x128xbf16> to vector<8x128xbf16>
    %cst_56 = arith.constant dense<0.000000e+00> : vector<8x128xf32>
    %96 = tpu.matmul %93, %95, %cst_56 {dimension_numbers = #tpu.dot_dimension_numbers<[1], [0], [0], [1], [0, 0, 1, 1], [], []>} : vector<8x8xbf16>, vector<8x128xbf16>, vector<8x128xf32> -> vector<8x128xf32>
    %97 = arith.addf %91, %96 : vector<8x128xf32>
    %98 = vector.extract_strided_slice %15 {offsets = [104, 0], sizes = [8, 8], strides = [1, 1]} : vector<128x8xf32> to vector<8x8xf32>
    %99 = arith.truncf %98 : vector<8x8xf32> to vector<8x8xbf16>
    %c13 = arith.constant 13 : index
    %c0_57 = arith.constant 0 : index
    %c0_58 = arith.constant 0 : index
    %100 = vector.load %arg7[%c13, %c0_57, %c0_58] : memref<16x8x128xbf16, #tpu.memory_space<vmem>>, vector<1x8x128xbf16>
    %101 = vector.shape_cast %100 : vector<1x8x128xbf16> to vector<8x128xbf16>
    %cst_59 = arith.constant dense<0.000000e+00> : vector<8x128xf32>
    %102 = tpu.matmul %99, %101, %cst_59 {dimension_numbers = #tpu.dot_dimension_numbers<[1], [0], [0], [1], [0, 0, 1, 1], [], []>} : vector<8x8xbf16>, vector<8x128xbf16>, vector<8x128xf32> -> vector<8x128xf32>
    %103 = arith.addf %97, %102 : vector<8x128xf32>
    %104 = vector.extract_strided_slice %15 {offsets = [112, 0], sizes = [8, 8], strides = [1, 1]} : vector<128x8xf32> to vector<8x8xf32>
    %105 = arith.truncf %104 : vector<8x8xf32> to vector<8x8xbf16>
    %c14 = arith.constant 14 : index
    %c0_60 = arith.constant 0 : index
    %c0_61 = arith.constant 0 : index
    %106 = vector.load %arg7[%c14, %c0_60, %c0_61] : memref<16x8x128xbf16, #tpu.memory_space<vmem>>, vector<1x8x128xbf16>
    %107 = vector.shape_cast %106 : vector<1x8x128xbf16> to vector<8x128xbf16>
    %cst_62 = arith.constant dense<0.000000e+00> : vector<8x128xf32>
    %108 = tpu.matmul %105, %107, %cst_62 {dimension_numbers = #tpu.dot_dimension_numbers<[1], [0], [0], [1], [0, 0, 1, 1], [], []>} : vector<8x8xbf16>, vector<8x128xbf16>, vector<8x128xf32> -> vector<8x128xf32>
    %109 = arith.addf %103, %108 : vector<8x128xf32>
    %110 = vector.extract_strided_slice %15 {offsets = [120, 0], sizes = [8, 8], strides = [1, 1]} : vector<128x8xf32> to vector<8x8xf32>
    %111 = arith.truncf %110 : vector<8x8xf32> to vector<8x8xbf16>
    %c15 = arith.constant 15 : index
    %c0_63 = arith.constant 0 : index
    %c0_64 = arith.constant 0 : index
    %112 = vector.load %arg7[%c15, %c0_63, %c0_64] : memref<16x8x128xbf16, #tpu.memory_space<vmem>>, vector<1x8x128xbf16>
    %113 = vector.shape_cast %112 : vector<1x8x128xbf16> to vector<8x128xbf16>
    %cst_65 = arith.constant dense<0.000000e+00> : vector<8x128xf32>
    %114 = tpu.matmul %111, %113, %cst_65 {dimension_numbers = #tpu.dot_dimension_numbers<[1], [0], [0], [1], [0, 0, 1, 1], [], []>} : vector<8x8xbf16>, vector<8x128xbf16>, vector<8x128xf32> -> vector<8x128xf32>
    %115 = arith.addf %109, %114 : vector<8x128xf32>
    %c0_66 = arith.constant 0 : index
    %c0_67 = arith.constant 0 : index
    %116 = vector.load %arg9[%c0_66, %c0_67] : memref<1x128xf32, #tpu.memory_space<vmem>>, vector<1x128xf32>
    %117 = vector.broadcast %116 : vector<1x128xf32> to vector<8x128xf32>
    %118 = arith.addf %115, %117 : vector<8x128xf32>
    %119 = tpu.iota {dimensions = array<i32: 1>} : vector<8x128xi32>
    %c64_i32 = arith.constant 64 : i32
    %120 = vector.broadcast %c64_i32 : i32 to vector<8x128xi32>
    %121 = arith.cmpi slt, %119, %120 : vector<8x128xi32>
    %c96_i32 = arith.constant 96 : i32
    %122 = vector.broadcast %c96_i32 : i32 to vector<8x128xi32>
    %123 = arith.cmpi sge, %119, %122 : vector<8x128xi32>
    %124 = arith.ori %121, %123 : vector<8x128xi1>
    %125 = arith.negf %118 : vector<8x128xf32>
    %126 = math.exp %125 : vector<8x128xf32>
    %cst_68 = arith.constant 1.000000e+00 : f32
    %127 = vector.broadcast %cst_68 : f32 to vector<8x128xf32>
    %128 = arith.addf %127, %126 : vector<8x128xf32>
    %129 = arith.divf %127, %128 : vector<8x128xf32>
    %130 = math.tanh %118 : vector<8x128xf32>
    %131 = arith.select %124, %129, %130 : vector<8x128xi1>, vector<8x128xf32>
    %132 = vector.extract_strided_slice %131 {offsets = [0, 0], sizes = [8, 32], strides = [1, 1]} : vector<8x128xf32> to vector<8x32xf32>
    %133 = vector.extract_strided_slice %131 {offsets = [0, 32], sizes = [8, 32], strides = [1, 1]} : vector<8x128xf32> to vector<8x32xf32>
    %134 = vector.extract_strided_slice %131 {offsets = [0, 64], sizes = [8, 32], strides = [1, 1]} : vector<8x128xf32> to vector<8x32xf32>
    %135 = vector.extract_strided_slice %131 {offsets = [0, 96], sizes = [8, 32], strides = [1, 1]} : vector<8x128xf32> to vector<8x32xf32>
    %c0_69 = arith.constant 0 : index
    %c0_70 = arith.constant 0 : index
    %136 = vector.load %arg2[%c0_69, %c0_70] : memref<8x32xf32, #tpu.memory_space<vmem>>, vector<8x32xf32>
    %137 = arith.mulf %133, %136 : vector<8x32xf32>
    %138 = arith.mulf %132, %134 : vector<8x32xf32>
    %139 = arith.addf %137, %138 : vector<8x32xf32>
    %140 = math.tanh %139 : vector<8x32xf32>
    %141 = arith.mulf %135, %140 : vector<8x32xf32>
    %142 = arith.truncf %141 : vector<8x32xf32> to vector<8x32xbf16>
    %c0_71 = arith.constant 0 : index
    %c0_72 = arith.constant 0 : index
    %143 = vector.load %arg10[%c0_71, %c0_72] : memref<32x128xbf16, #tpu.memory_space<vmem>>, vector<32x128xbf16>
    %cst_73 = arith.constant dense<0.000000e+00> : vector<8x128xf32>
    %144 = tpu.matmul %142, %143, %cst_73 {dimension_numbers = #tpu.dot_dimension_numbers<[1], [0], [0], [1], [0, 0, 1, 1], [], []>} : vector<8x32xbf16>, vector<32x128xbf16>, vector<8x128xf32> -> vector<8x128xf32>
    %c0_74 = arith.constant 0 : index
    %c0_75 = arith.constant 0 : index
    %145 = vector.load %arg11[%c0_74, %c0_75] : memref<1x128xf32, #tpu.memory_space<vmem>>, vector<1x128xf32>
    %146 = vector.broadcast %145 : vector<1x128xf32> to vector<8x128xf32>
    %147 = arith.addf %144, %146 : vector<8x128xf32>
    %148 = vector.extract_strided_slice %147 {offsets = [0, 0], sizes = [8, 1], strides = [1, 1]} : vector<8x128xf32> to vector<8x1xf32>
    %149 = vector.extract_strided_slice %147 {offsets = [0, 1], sizes = [8, 6], strides = [1, 1]} : vector<8x128xf32> to vector<8x6xf32>
    %cst_76 = arith.constant dense<0xFF800000> : vector<8xf32>
    %150 = vector.multi_reduction <maximumf>, %149, %cst_76 [1] : vector<8x6xf32> to vector<8xf32>
    %151 = vector.shape_cast %150 : vector<8xf32> to vector<8x1xf32>
    %152 = vector.broadcast %151 : vector<8x1xf32> to vector<8x6xf32>
    %153 = arith.subf %149, %152 : vector<8x6xf32>
    %154 = math.exp %153 : vector<8x6xf32>
    %cst_77 = arith.constant dense<0.000000e+00> : vector<8xf32>
    %155 = vector.multi_reduction <add>, %154, %cst_77 [1] : vector<8x6xf32> to vector<8xf32>
    %156 = vector.shape_cast %155 : vector<8xf32> to vector<8x1xf32>
    %157 = tpu.reciprocal %156 : vector<8x1xf32> -> vector<8x1xf32>
    %158 = vector.broadcast %157 : vector<8x1xf32> to vector<8x6xf32>
    %159 = arith.mulf %154, %158 : vector<8x6xf32>
    %cst_78 = arith.constant 0.000000e+00 : f32
    %160 = vector.broadcast %cst_78 : f32 to vector<8x57xf32>
    %161 = tpu.concatenate %141, %139, %159, %148, %160 in 1 : vector<8x32xf32>, vector<8x32xf32>, vector<8x6xf32>, vector<8x1xf32>, vector<8x57xf32> -> vector<8x128xf32>
    %c0_79 = arith.constant 0 : index
    %c0_80 = arith.constant 0 : index
    %162 = vector.load %arg12[%c0_79, %c0_80] : memref<8x128xf32, #tpu.memory_space<vmem>>, vector<8x128xf32>
    tpu.vector_store %arg12[%c0_79, %c0_80], %161 {strides = array<i32>} : memref<8x128xf32, #tpu.memory_space<vmem>>, vector<8x128xf32>,
    return
  }
}

</mosaic_0001>

<llo_original>
// kernel: _lambda_.1
$region0: #{_lambda_.1}
  #allocation0 [shape = 'u32[]', space=smem, size = 0x4, offset = 0x4, fixed_abs, tag = 'smem constant byte address 0x4 - core index']
  #allocation1 [shape = 'u32[144,128]{1,0:T(1,128)}', space=vmem, size = 0x12000, scoped, tag = 'internal scratch']
  %s0 = inlined_call_operand.vmem [shape: bf16[128,64], index: 0, kind: input, shape index: {}]
  %s1 = inlined_call_operand.vmem [shape: f32[8,32], index: 1, kind: input, shape index: {}]
  %s2 = inlined_call_operand.vmem [shape: f32[8,32], index: 2, kind: input, shape index: {}]
  %s3 = inlined_call_operand.vmem [shape: bf16[64,32], index: 3, kind: input, shape index: {}]
  %s4 = inlined_call_operand.vmem [shape: f32[1,32], index: 4, kind: input, shape index: {}]
  %s5 = inlined_call_operand.vmem [shape: bf16[32,8], index: 5, kind: input, shape index: {}]
  %s6 = inlined_call_operand.vmem [shape: f32[1,8], index: 6, kind: input, shape index: {}]
  %s7 = inlined_call_operand.vmem [shape: bf16[16,8,128], index: 7, kind: input, shape index: {}]
  %s8 = inlined_call_operand.vmem [shape: bf16[32,128], index: 8, kind: input, shape index: {}]
  %s9 = inlined_call_operand.vmem [shape: f32[1,128], index: 9, kind: input, shape index: {}]
  %s10 = inlined_call_operand.vmem [shape: bf16[32,128], index: 10, kind: input, shape index: {}]
  %s11 = inlined_call_operand.vmem [shape: f32[1,128], index: 11, kind: input, shape index: {}]
  %s12 = inlined_call_operand.vmem [shape: f32[8,128], index: 12, kind: output, shape index: {}]
  %s13 = sld [smem:[#allocation0]]
  $region58: #{_lambda_.1} parent=0
    _
  %s15 = ssub.s32 1, %s13
  %s16 = scalar_select 0, %s15, %s13
  // Predicated region
  $region2: #{_lambda_.1} parent=0 // pred_check
    _
  $region3: #{_lambda_.1} parent=0 // pred_check_branch
    %18 = sbr.rel (0) target = $region5
  $region4: #{_lambda_.1} parent=0 // pred_region
    _
  $region5: #{_lambda_.1} parent=0 // pred_fallthru
    _
  // Predicated region
  $region6: #{_lambda_.1} parent=0 // pred_check
    _
  $region7: #{_lambda_.1} parent=0 // pred_check_branch
    %20 = sbr.rel (0) target = $region9
  $region8: #{_lambda_.1} parent=0 // pred_region
    _
  $region9: #{_lambda_.1} parent=0 // pred_fallthru
    _
  // Predicated region
  $region10: #{_lambda_.1} parent=0 // pred_check
    _
  $region11: #{_lambda_.1} parent=0 // pred_check_branch
    %22 = sbr.rel (0) target = $region13
  $region12: #{_lambda_.1} parent=0 // pred_region
    _
  $region13: #{_lambda_.1} parent=0 // pred_fallthru
    _
  // Predicated region
  $region14: #{_lambda_.1} parent=0 // pred_check
    _
  $region15: #{_lambda_.1} parent=0 // pred_check_branch
    %24 = sbr.rel (0) target = $region17
  $region16: #{_lambda_.1} parent=0 // pred_region
    _
  $region17: #{_lambda_.1} parent=0 // pred_fallthru
    _
  // Predicated region
  $region18: #{_lambda_.1} parent=0 // pred_check
    _
  $region19: #{_lambda_.1} parent=0 // pred_check_branch
    %26 = sbr.rel (0) target = $region21
  $region20: #{_lambda_.1} parent=0 // pred_region
    _
  $region21: #{_lambda_.1} parent=0 // pred_fallthru
    _
  // Predicated region
  $region22: #{_lambda_.1} parent=0 // pred_check
    _
  $region23: #{_lambda_.1} parent=0 // pred_check_branch
    %28 = sbr.rel (0) target = $region25
  $region24: #{_lambda_.1} parent=0 // pred_region
    _
  $region25: #{_lambda_.1} parent=0 // pred_fallthru
    _
  // Predicated region
  $region26: #{_lambda_.1} parent=0 // pred_check
    _
  $region27: #{_lambda_.1} parent=0 // pred_check_branch
    %30 = sbr.rel (0) target = $region29
  $region28: #{_lambda_.1} parent=0 // pred_region
    _
  $region29: #{_lambda_.1} parent=0 // pred_fallthru
    _
  // Predicated region
  $region30: #{_lambda_.1} parent=0 // pred_check
    _
  $region31: #{_lambda_.1} parent=0 // pred_check_branch
    %32 = sbr.rel (0) target = $region33
  $region32: #{_lambda_.1} parent=0 // pred_region
    _
  $region33: #{_lambda_.1} parent=0 // pred_fallthru
    _
  // Predicated region
  $region34: #{_lambda_.1} parent=0 // pred_check
    _
  $region35: #{_lambda_.1} parent=0 // pred_check_branch
    %34 = sbr.rel (0) target = $region37
  $region36: #{_lambda_.1} parent=0 // pred_region
    _
  $region37: #{_lambda_.1} parent=0 // pred_fallthru
    _
  // Predicated region
  $region38: #{_lambda_.1} parent=0 // pred_check
    _
  $region39: #{_lambda_.1} parent=0 // pred_check_branch
    %36 = sbr.rel (0) target = $region41
  $region40: #{_lambda_.1} parent=0 // pred_region
    _
  $region41: #{_lambda_.1} parent=0 // pred_fallthru
    _
  // Predicated region
  $region42: #{_lambda_.1} parent=0 // pred_check
    _
  $region43: #{_lambda_.1} parent=0 // pred_check_branch
    %38 = sbr.rel (0) target = $region45
  $region44: #{_lambda_.1} parent=0 // pred_region
    _
  $region45: #{_lambda_.1} parent=0 // pred_fallthru
    _
  // Predicated region
  $region46: #{_lambda_.1} parent=0 // pred_check
    _
  $region47: #{_lambda_.1} parent=0 // pred_check_branch
    %40 = sbr.rel (0) target = $region49
  $region48: #{_lambda_.1} parent=0 // pred_region
    _
  $region49: #{_lambda_.1} parent=0 // pred_fallthru
    _
  %v42 = vld [vmem:[%s0] sm:$0xf]
  %v43 = vld [vmem:[%s0 + $0x4] sm:$0xf]
  %v44 = vld [vmem:[%s0 + $0x8] sm:$0xf]
  %v45 = vld [vmem:[%s0 + $0xc] sm:$0xf]
  %v46 = vld [vmem:[%s0 + $0x10] sm:$0xf]
  %v47 = vld [vmem:[%s0 + $0x14] sm:$0xf]
  %v48 = vld [vmem:[%s0 + $0x18] sm:$0xf]
  %v49 = vld [vmem:[%s0 + $0x1c] sm:$0xf]
  %v50 = vld [vmem:[%s0 + $0x20] sm:$0xf]
  %v51 = vld [vmem:[%s0 + $0x24] sm:$0xf]
  %v52 = vld [vmem:[%s0 + $0x28] sm:$0xf]
  %v53 = vld [vmem:[%s0 + $0x2c] sm:$0xf]
  %v54 = vld [vmem:[%s0 + $0x30] sm:$0xf]
  %v55 = vld [vmem:[%s0 + $0x34] sm:$0xf]
  %v56 = vld [vmem:[%s0 + $0x38] sm:$0xf]
  %v57 = vld [vmem:[%s0 + $0x3c] sm:$0xf]
  %v58 = vld [vmem:[%s3] sm:$0xf]
  %v59 = vld [vmem:[%s3 + $0x4] sm:$0xf]
  %v60 = vld [vmem:[%s3 + $0x8] sm:$0xf]
  %v61 = vld [vmem:[%s3 + $0xc] sm:$0xf]
  %v62 = vld [vmem:[%s3 + $0x10] sm:$0xf]
  %v63 = vld [vmem:[%s3 + $0x14] sm:$0xf]
  %v64 = vld [vmem:[%s3 + $0x18] sm:$0xf]
  %v65 = vld [vmem:[%s3 + $0x1c] sm:$0xf]
  %v66 = vld [vmem:[%s4] sm:$0x1]
  %v68 = vlaneseq
  %v69 = vshrl.u32 %v68, 7
  %v70 = vsub.s32 0, %v69
  %v71 = vrot.slane %v66, %v70
  %v89 = vunpack.c.l.b16 %v42
  %v90 = vunpack.c.l.b16 %v43
  %v91 = vunpack.c.l.b16 %v44
  %v92 = vunpack.c.l.b16 %v45
  %v93 = vunpack.c.l.b16 %v46
  %v94 = vunpack.c.l.b16 %v47
  %v95 = vunpack.c.l.b16 %v48
  %v96 = vunpack.c.l.b16 %v49
  %v97 = vunpack.c.l.b16 %v50
  %v98 = vunpack.c.l.b16 %v51
  %v99 = vunpack.c.l.b16 %v52
  %v100 = vunpack.c.l.b16 %v53
  %v101 = vunpack.c.l.b16 %v54
  %v102 = vunpack.c.l.b16 %v55
  %v103 = vunpack.c.l.b16 %v56
  %v104 = vunpack.c.l.b16 %v57
  %v105 = vpack.c.b16 %v90, %v89
  %v106 = vpack.c.b16 %v92, %v91
  %v107 = vpack.c.b16 %v94, %v93
  %v108 = vpack.c.b16 %v96, %v95
  %v109 = vpack.c.b16 %v98, %v97
  %v110 = vpack.c.b16 %v100, %v99
  %v111 = vpack.c.b16 %v102, %v101
  %v112 = vpack.c.b16 %v104, %v103
  %v121 = vunpack.c.l.b16 %v58
  %v122 = vunpack.c.l.b16 %v59
  %v123 = vunpack.c.l.b16 %v60
  %v124 = vunpack.c.l.b16 %v61
  %v125 = vunpack.c.l.b16 %v62
  %v126 = vunpack.c.l.b16 %v63
  %v127 = vunpack.c.l.b16 %v64
  %v128 = vunpack.c.l.b16 %v65
  %v129 = vpack.c.b16 %v122, %v121
  %v130 = vpack.c.b16 %v124, %v123
  %v131 = vpack.c.b16 %v126, %v125
  %v132 = vpack.c.b16 %v128, %v127
  %vm137 = vcmask 523264
  %v139 = vsel %vm137, %v105, 0
  %v142 = vsel %vm137, %v106, 0
  %v145 = vsel %vm137, %v107, 0
  %v148 = vsel %vm137, %v108, 0
  %v151 = vsel %vm137, %v109, 0
  %v154 = vsel %vm137, %v110, 0
  %v157 = vsel %vm137, %v111, 0
  %v160 = vsel %vm137, %v112, 0
  %162 = vmatprep.subr.bf16.mxu0 0
  %163 = vmatpush1.bf16.msra.mxu0 0
  %164 = vmatprep.subr.bf16.mxu0 0
  %165 = vmatpush1.bf16.msra.mxu0 0
  %166 = vmatprep.subr.bf16.mxu0 0
  %167 = vmatpush1.bf16.msra.mxu0 0
  %168 = vmatprep.subr.bf16.mxu0 0
  %169 = vmatpush1.bf16.msra.mxu0 0
  %170 = vmatprep.subr.bf16.mxu0 0
  %171 = vmatpush1.bf16.msra.mxu0 %v132
  %172 = vmatprep.subr.bf16.mxu0 0
  %173 = vmatpush1.bf16.msra.mxu0 %v131
  %174 = vmatprep.subr.bf16.mxu0 0
  %175 = vmatpush1.bf16.msra.mxu0 %v130
  %176 = vmatprep.subr.bf16.mxu0 0
  %177 = vmatpush1.bf16.msra.mxu0 %v129
  %178 = vmatprep.subr.bf16.mxu0 0
  %179 = vmatpush2.bf16.msra.mxu0 0
  %180 = vmatprep.subr.bf16.mxu0 0
  %181 = vmatpush2.bf16.msra.mxu0 0
  %182 = vmatprep.subr.bf16.mxu0 0
  %183 = vmatpush2.bf16.msra.mxu0 0
  %184 = vmatprep.subr.bf16.mxu0 0
  %185 = vmatpush2.bf16.msra.mxu0 0
  %186 = vmatprep.subr.bf16.mxu0 0
  %187 = vmatpush2.bf16.msra.mxu0 0
  %188 = vmatprep.subr.bf16.mxu0 0
  %189 = vmatpush2.bf16.msra.mxu0 0
  %190 = vmatprep.subr.bf16.mxu0 0
  %191 = vmatpush2.bf16.msra.mxu0 0
  %192 = vmatprep.subr.bf16.mxu0 0
  %193 = vmatpush2.bf16.msra.mxu0 0
  %194 = vmatprep.mubr.bf16.mxu0 0
  %195 = vmatmul.mubr.bf16.gmra.mxu0 %v139
  %v196 = vpop.f32.mrf.mxu0
  %v197 = vadd.f32 %v71, %v196
  %v198 = vpop.f32.mrf.mxu0
  %v199 = vpop.f32.mrf.mxu0
  %v200 = vadd.f32 %v71, %v199
  %v201 = vpop.f32.mrf.mxu0
  %202 = vmatprep.mubr.bf16.mxu0 0
  %203 = vmatmul.mubr.bf16.gmra.mxu0 %v142
  %v204 = vpop.f32.mrf.mxu0
  %v205 = vadd.f32 %v71, %v204
  %v206 = vpop.f32.mrf.mxu0
  %v207 = vpop.f32.mrf.mxu0
  %v208 = vadd.f32 %v71, %v207
  %v209 = vpop.f32.mrf.mxu0
  %210 = vmatprep.mubr.bf16.mxu0 0
  %211 = vmatmul.mubr.bf16.gmra.mxu0 %v145
  %v212 = vpop.f32.mrf.mxu0
  %v213 = vadd.f32 %v71, %v212
  %v214 = vpop.f32.mrf.mxu0
  %v215 = vpop.f32.mrf.mxu0
  %v216 = vadd.f32 %v71, %v215
  %v217 = vpop.f32.mrf.mxu0
  %218 = vmatprep.mubr.bf16.mxu0 0
  %219 = vmatmul.mubr.bf16.gmra.mxu0 %v148
  %v220 = vpop.f32.mrf.mxu0
  %v221 = vadd.f32 %v71, %v220
  %v222 = vpop.f32.mrf.mxu0
  %v223 = vpop.f32.mrf.mxu0
  %v224 = vadd.f32 %v71, %v223
  %v225 = vpop.f32.mrf.mxu0
  %226 = vmatprep.mubr.bf16.mxu0 0
  %227 = vmatmul.mubr.bf16.gmra.mxu0 %v151
  %v228 = vpop.f32.mrf.mxu0
  %v229 = vadd.f32 %v71, %v228
  %v230 = vpop.f32.mrf.mxu0
  %v231 = vpop.f32.mrf.mxu0
  %v232 = vadd.f32 %v71, %v231
  %v233 = vpop.f32.mrf.mxu0
  %234 = vmatprep.mubr.bf16.mxu0 0
  %235 = vmatmul.mubr.bf16.gmra.mxu0 %v154
  %v236 = vpop.f32.mrf.mxu0
  %v237 = vadd.f32 %v71, %v236
  %v238 = vpop.f32.mrf.mxu0
  %v239 = vpop.f32.mrf.mxu0
  %v240 = vadd.f32 %v71, %v239
  %v241 = vpop.f32.mrf.mxu0
  %242 = vmatprep.mubr.bf16.mxu0 0
  %243 = vmatmul.mubr.bf16.gmra.mxu0 %v157
  %v244 = vpop.f32.mrf.mxu0
  %v245 = vadd.f32 %v71, %v244
  %v246 = vpop.f32.mrf.mxu0
  %v247 = vpop.f32.mrf.mxu0
  %v248 = vadd.f32 %v71, %v247
  %v249 = vpop.f32.mrf.mxu0
  %250 = vmatprep.mubr.bf16.mxu0 0
  %251 = vmatmul.mubr.bf16.gmra.mxu0 %v160
  %v252 = vpop.f32.mrf.mxu0
  %v253 = vadd.f32 %v71, %v252
  %v254 = vpop.f32.mrf.mxu0
  %v255 = vpop.f32.mrf.mxu0
  %v256 = vadd.f32 %v71, %v255
  %v257 = vpop.f32.mrf.mxu0
  %258 = vdwg.mxu0
  %v259 = vmax.f32 %v197, 0.0
  %v260 = vmax.f32 %v200, 0.0
  %v261 = vmax.f32 %v205, 0.0
  %v262 = vmax.f32 %v208, 0.0
  %v263 = vmax.f32 %v213, 0.0
  %v264 = vmax.f32 %v216, 0.0
  %v265 = vmax.f32 %v221, 0.0
  %v266 = vmax.f32 %v224, 0.0
  %v267 = vmax.f32 %v229, 0.0
  %v268 = vmax.f32 %v232, 0.0
  %v269 = vmax.f32 %v237, 0.0
  %v270 = vmax.f32 %v240, 0.0
  %v271 = vmax.f32 %v245, 0.0
  %v272 = vmax.f32 %v248, 0.0
  %v273 = vmax.f32 %v253, 0.0
  %v274 = vmax.f32 %v256, 0.0
  %v275 = vpack.c.bf16 %v260, %v259
  %v276 = vpack.c.bf16 %v262, %v261
  %v277 = vpack.c.bf16 %v264, %v263
  %v278 = vpack.c.bf16 %v266, %v265
  %v279 = vpack.c.bf16 %v268, %v267
  %v280 = vpack.c.bf16 %v270, %v269
  %v281 = vpack.c.bf16 %v272, %v271
  %v282 = vpack.c.bf16 %v274, %v273
  %v283 = vld [vmem:[%s5] sm:$0xf]
  %v284 = vld [vmem:[%s5 + $0x4] sm:$0xf]
  %v285 = vld [vmem:[%s5 + $0x8] sm:$0xf]
  %v286 = vld [vmem:[%s5 + $0xc] sm:$0xf]
  %v287 = vld [vmem:[%s6] sm:$0x1]
  %v289 = vlaneseq
  %v290 = vshrl.u32 %v289, 7
  %v291 = vsub.s32 0, %v290
  %v292 = vrot.slane %v287, %v291
  %v298 = vunpack.c.l.b16 %v283
  %v299 = vunpack.c.l.b16 %v284
  %v300 = vunpack.c.l.b16 %v285
  %v301 = vunpack.c.l.b16 %v286
  %v302 = vpack.c.b16 %v299, %v298
  %v303 = vpack.c.b16 %v301, %v300
  %vm306 = vcmask 261120
  %v308 = vsel %vm306, %v275, 0
  %v311 = vsel %vm306, %v276, 0
  %v314 = vsel %vm306, %v277, 0
  %v317 = vsel %vm306, %v278, 0
  %v320 = vsel %vm306, %v279, 0
  %v323 = vsel %vm306, %v280, 0
  %v326 = vsel %vm306, %v281, 0
  %v329 = vsel %vm306, %v282, 0
  %331 = vmatprep.subr.bf16.mxu0 0
  %332 = vmatpush1.bf16.msra.mxu0 0
  %333 = vmatprep.subr.bf16.mxu0 0
  %334 = vmatpush1.bf16.msra.mxu0 0
  %335 = vmatprep.subr.bf16.mxu0 0
  %336 = vmatpush1.bf16.msra.mxu0 0
  %337 = vmatprep.subr.bf16.mxu0 0
  %338 = vmatpush1.bf16.msra.mxu0 0
  %339 = vmatprep.subr.bf16.mxu0 0
  %340 = vmatpush1.bf16.msra.mxu0 0
  %341 = vmatprep.subr.bf16.mxu0 0
  %342 = vmatpush1.bf16.msra.mxu0 0
  %343 = vmatprep.subr.bf16.mxu0 0
  %344 = vmatpush1.bf16.msra.mxu0 %v303
  %345 = vmatprep.subr.bf16.mxu0 0
  %346 = vmatpush1.bf16.msra.mxu0 %v302
  %347 = vmatprep.subr.bf16.mxu0 0
  %348 = vmatpush2.bf16.msra.mxu0 0
  %349 = vmatprep.subr.bf16.mxu0 0
  %350 = vmatpush2.bf16.msra.mxu0 0
  %351 = vmatprep.subr.bf16.mxu0 0
  %352 = vmatpush2.bf16.msra.mxu0 0
  %353 = vmatprep.subr.bf16.mxu0 0
  %354 = vmatpush2.bf16.msra.mxu0 0
  %355 = vmatprep.subr.bf16.mxu0 0
  %356 = vmatpush2.bf16.msra.mxu0 0
  %357 = vmatprep.subr.bf16.mxu0 0
  %358 = vmatpush2.bf16.msra.mxu0 0
  %359 = vmatprep.subr.bf16.mxu0 0
  %360 = vmatpush2.bf16.msra.mxu0 0
  %361 = vmatprep.subr.bf16.mxu0 0
  %362 = vmatpush2.bf16.msra.mxu0 0
  %363 = vmatprep.mubr.bf16.mxu0 0
  %364 = vmatmul.mubr.bf16.gmra.mxu0 %v308
  %v365 = vpop.f32.mrf.mxu0
  %v366 = vadd.f32 %v292, %v365
  %v367 = vpop.f32.mrf.mxu0
  %v368 = vpop.f32.mrf.mxu0
  %v369 = vadd.f32 %v292, %v368
  %v370 = vpop.f32.mrf.mxu0
  %371 = vmatprep.mubr.bf16.mxu0 0
  %372 = vmatmul.mubr.bf16.gmra.mxu0 %v311
  %v373 = vpop.f32.mrf.mxu0
  %v374 = vadd.f32 %v292, %v373
  %v375 = vpop.f32.mrf.mxu0
  %v376 = vpop.f32.mrf.mxu0
  %v377 = vadd.f32 %v292, %v376
  %v378 = vpop.f32.mrf.mxu0
  %379 = vmatprep.mubr.bf16.mxu0 0
  %380 = vmatmul.mubr.bf16.gmra.mxu0 %v314
  %v381 = vpop.f32.mrf.mxu0
  %v382 = vadd.f32 %v292, %v381
  %v383 = vpop.f32.mrf.mxu0
  %v384 = vpop.f32.mrf.mxu0
  %v385 = vadd.f32 %v292, %v384
  %v386 = vpop.f32.mrf.mxu0
  %387 = vmatprep.mubr.bf16.mxu0 0
  %388 = vmatmul.mubr.bf16.gmra.mxu0 %v317
  %v389 = vpop.f32.mrf.mxu0
  %v390 = vadd.f32 %v292, %v389
  %v391 = vpop.f32.mrf.mxu0
  %v392 = vpop.f32.mrf.mxu0
  %v393 = vadd.f32 %v292, %v392
  %v394 = vpop.f32.mrf.mxu0
  %395 = vmatprep.mubr.bf16.mxu0 0
  %396 = vmatmul.mubr.bf16.gmra.mxu0 %v320
  %v397 = vpop.f32.mrf.mxu0
  %v398 = vadd.f32 %v292, %v397
  %v399 = vpop.f32.mrf.mxu0
  %v400 = vpop.f32.mrf.mxu0
  %v401 = vadd.f32 %v292, %v400
  %v402 = vpop.f32.mrf.mxu0
  %403 = vmatprep.mubr.bf16.mxu0 0
  %404 = vmatmul.mubr.bf16.gmra.mxu0 %v323
  %v405 = vpop.f32.mrf.mxu0
  %v406 = vadd.f32 %v292, %v405
  %v407 = vpop.f32.mrf.mxu0
  %v408 = vpop.f32.mrf.mxu0
  %v409 = vadd.f32 %v292, %v408
  %v410 = vpop.f32.mrf.mxu0
  %411 = vmatprep.mubr.bf16.mxu0 0
  %412 = vmatmul.mubr.bf16.gmra.mxu0 %v326
  %v413 = vpop.f32.mrf.mxu0
  %v414 = vadd.f32 %v292, %v413
  %v415 = vpop.f32.mrf.mxu0
  %v416 = vpop.f32.mrf.mxu0
  %v417 = vadd.f32 %v292, %v416
  %v418 = vpop.f32.mrf.mxu0
  %419 = vmatprep.mubr.bf16.mxu0 0
  %420 = vmatmul.mubr.bf16.gmra.mxu0 %v329
  %v421 = vpop.f32.mrf.mxu0
  %v422 = vadd.f32 %v292, %v421
  %v423 = vpop.f32.mrf.mxu0
  %v424 = vpop.f32.mrf.mxu0
  %v425 = vadd.f32 %v292, %v424
  %v426 = vpop.f32.mrf.mxu0
  %427 = vdwg.mxu0
  %v428 = vmax.f32 %v366, 0.0
  %v429 = vmax.f32 %v369, 0.0
  %v430 = vmax.f32 %v374, 0.0
  %v431 = vmax.f32 %v377, 0.0
  %v432 = vmax.f32 %v382, 0.0
  %v433 = vmax.f32 %v385, 0.0
  %v434 = vmax.f32 %v390, 0.0
  %v435 = vmax.f32 %v393, 0.0
  %v436 = vmax.f32 %v398, 0.0
  %v437 = vmax.f32 %v401, 0.0
  %v438 = vmax.f32 %v406, 0.0
  %v439 = vmax.f32 %v409, 0.0
  %v440 = vmax.f32 %v414, 0.0
  %v441 = vmax.f32 %v417, 0.0
  %v442 = vmax.f32 %v422, 0.0
  %v443 = vmax.f32 %v425, 0.0
  %v444 = vld [vmem:[%s1] sm:$0xff]
  %v445 = vpack.c.bf16 %v444, %v444
  %v446 = vld [vmem:[%s8] sm:$0xf]
  %v447 = vld [vmem:[%s8 + $0x4] sm:$0xf]
  %v448 = vld [vmem:[%s8 + $0x8] sm:$0xf]
  %v449 = vld [vmem:[%s8 + $0xc] sm:$0xf]
  %v450 = vpack.c.bf16 %v428, %v428
  %v451 = vld [vmem:[%s7] sm:$0xf]
  %vm452 = vcmask 64512
  %v454 = vsel %vm452, %v450, 0
  %vm456 = vcmask 1043456
  %v458 = vsel %vm456, %v451, 0
  %460 = vmatprep.subr.bf16.mxu0 0
  %461 = vmatpush1.bf16.msra.mxu0 0
  %462 = vmatprep.subr.bf16.mxu0 0
  %463 = vmatpush1.bf16.msra.mxu0 0
  %464 = vmatprep.subr.bf16.mxu0 0
  %465 = vmatpush1.bf16.msra.mxu0 0
  %466 = vmatprep.subr.bf16.mxu0 0
  %467 = vmatpush1.bf16.msra.mxu0 0
  %468 = vmatprep.subr.bf16.mxu0 0
  %469 = vmatpush1.bf16.msra.mxu0 0
  %470 = vmatprep.subr.bf16.mxu0 0
  %471 = vmatpush1.bf16.msra.mxu0 0
  %472 = vmatprep.subr.bf16.mxu0 0
  %473 = vmatpush1.bf16.msra.mxu0 0
  %474 = vmatprep.subr.bf16.mxu0 0
  %475 = vmatpush1.bf16.msra.mxu0 %v458
  %476 = vmatprep.subr.bf16.mxu0 0
  %477 = vmatpush2.bf16.msra.mxu0 0
  %478 = vmatprep.subr.bf16.mxu0 0
  %479 = vmatpush2.bf16.msra.mxu0 0
  %480 = vmatprep.subr.bf16.mxu0 0
  %481 = vmatpush2.bf16.msra.mxu0 0
  %482 = vmatprep.subr.bf16.mxu0 0
  %483 = vmatpush2.bf16.msra.mxu0 0
  %484 = vmatprep.subr.bf16.mxu0 0
  %485 = vmatpush2.bf16.msra.mxu0 0
  %486 = vmatprep.subr.bf16.mxu0 0
  %487 = vmatpush2.bf16.msra.mxu0 0
  %488 = vmatprep.subr.bf16.mxu0 0
  %489 = vmatpush2.bf16.msra.mxu0 0
  %490 = vmatprep.subr.bf16.mxu0 0
  %491 = vmatpush2.bf16.msra.mxu0 0
  %492 = vmatprep.mubr.bf16.mxu0 0
  %493 = vmatmul.mubr.bf16.gmra.mxu0 %v454
  %v494 = vpop.f32.mrf.mxu0
  %v495 = vadd.f32 0.0, %v494
  %v496 = vpop.f32.mrf.mxu0
  %v497 = vpop.f32.mrf.mxu0
  %v498 = vpop.f32.mrf.mxu0
  %499 = vdwg.mxu0
  %v504 = vunpack.c.l.b16 %v446
  %v505 = vunpack.c.l.b16 %v447
  %v506 = vunpack.c.l.b16 %v448
  %v507 = vunpack.c.l.b16 %v449
  %v508 = vpack.c.b16 %v505, %v504
  %v509 = vpack.c.b16 %v507, %v506
  %v513 = vsel %vm306, %v445, 0
  %515 = vmatprep.subr.bf16.mxu0 0
  %516 = vmatpush1.bf16.msra.mxu0 0
  %517 = vmatprep.subr.bf16.mxu0 0
  %518 = vmatpush1.bf16.msra.mxu0 0
  %519 = vmatprep.subr.bf16.mxu0 0
  %520 = vmatpush1.bf16.msra.mxu0 0
  %521 = vmatprep.subr.bf16.mxu0 0
  %522 = vmatpush1.bf16.msra.mxu0 0
  %523 = vmatprep.subr.bf16.mxu0 0
  %524 = vmatpush1.bf16.msra.mxu0 0
  %525 = vmatprep.subr.bf16.mxu0 0
  %526 = vmatpush1.bf16.msra.mxu0 0
  %527 = vmatprep.subr.bf16.mxu0 0
  %528 = vmatpush1.bf16.msra.mxu0 %v509
  %529 = vmatprep.subr.bf16.mxu0 0
  %530 = vmatpush1.bf16.msra.mxu0 %v508
  %531 = vmatprep.subr.bf16.mxu0 0
  %532 = vmatpush2.bf16.msra.mxu0 0
  %533 = vmatprep.subr.bf16.mxu0 0
  %534 = vmatpush2.bf16.msra.mxu0 0
  %535 = vmatprep.subr.bf16.mxu0 0
  %536 = vmatpush2.bf16.msra.mxu0 0
  %537 = vmatprep.subr.bf16.mxu0 0
  %538 = vmatpush2.bf16.msra.mxu0 0
  %539 = vmatprep.subr.bf16.mxu0 0
  %540 = vmatpush2.bf16.msra.mxu0 0
  %541 = vmatprep.subr.bf16.mxu0 0
  %542 = vmatpush2.bf16.msra.mxu0 0
  %543 = vmatprep.subr.bf16.mxu0 0
  %544 = vmatpush2.bf16.msra.mxu0 0
  %545 = vmatprep.subr.bf16.mxu0 0
  %546 = vmatpush2.bf16.msra.mxu0 0
  %547 = vmatprep.mubr.bf16.mxu0 0
  %548 = vmatmul.mubr.bf16.gmra.mxu0 %v513
  %v549 = vpop.f32.mrf.mxu0
  %v550 = vadd.f32 %v495, %v549
  %v551 = vpop.f32.mrf.mxu0
  %v552 = vpop.f32.mrf.mxu0
  %v553 = vpop.f32.mrf.mxu0
  %554 = vdwg.mxu0
  %v555 = vpack.c.bf16 %v429, %v429
  %s556 = scalar_lea.vmem %s7, 4
  %v557 = vld [vmem:[%s556] sm:$0xf]
  %v559 = vsel %vm452, %v555, 0
  %v562 = vsel %vm456, %v557, 0
  %564 = vmatprep.subr.bf16.mxu0 0
  %565 = vmatpush1.bf16.msra.mxu0 0
  %566 = vmatprep.subr.bf16.mxu0 0
  %567 = vmatpush1.bf16.msra.mxu0 0
  %568 = vmatprep.subr.bf16.mxu0 0
  %569 = vmatpush1.bf16.msra.mxu0 0
  %570 = vmatprep.subr.bf16.mxu0 0
  %571 = vmatpush1.bf16.msra.mxu0 0
  %572 = vmatprep.subr.bf16.mxu0 0
  %573 = vmatpush1.bf16.msra.mxu0 0
  %574 = vmatprep.subr.bf16.mxu0 0
  %575 = vmatpush1.bf16.msra.mxu0 0
  %576 = vmatprep.subr.bf16.mxu0 0
  %577 = vmatpush1.bf16.msra.mxu0 0
  %578 = vmatprep.subr.bf16.mxu0 0
  %579 = vmatpush1.bf16.msra.mxu0 %v562
  %580 = vmatprep.subr.bf16.mxu0 0
  %581 = vmatpush2.bf16.msra.mxu0 0
  %582 = vmatprep.subr.bf16.mxu0 0
  %583 = vmatpush2.bf16.msra.mxu0 0
  %584 = vmatprep.subr.bf16.mxu0 0
  %585 = vmatpush2.bf16.msra.mxu0 0
  %586 = vmatprep.subr.bf16.mxu0 0
  %587 = vmatpush2.bf16.msra.mxu0 0
  %588 = vmatprep.subr.bf16.mxu0 0
  %589 = vmatpush2.bf16.msra.mxu0 0
  %590 = vmatprep.subr.bf16.mxu0 0
  %591 = vmatpush2.bf16.msra.mxu0 0
  %592 = vmatprep.subr.bf16.mxu0 0
  %593 = vmatpush2.bf16.msra.mxu0 0
  %594 = vmatprep.subr.bf16.mxu0 0
  %595 = vmatpush2.bf16.msra.mxu0 0
  %596 = vmatprep.mubr.bf16.mxu0 0
  %597 = vmatmul.mubr.bf16.gmra.mxu0 %v559
  %v598 = vpop.f32.mrf.mxu0
  %v599 = vadd.f32 0.0, %v598
  %v600 = vpop.f32.mrf.mxu0
  %v601 = vpop.f32.mrf.mxu0
  %v602 = vpop.f32.mrf.mxu0
  %603 = vdwg.mxu0
  %v604 = vadd.f32 %v550, %v599
  %v605 = vpack.c.bf16 %v430, %v430
  %s606 = scalar_lea.vmem %s7, 8
  %v607 = vld [vmem:[%s606] sm:$0xf]
  %v609 = vsel %vm452, %v605, 0
  %v612 = vsel %vm456, %v607, 0
  %614 = vmatprep.subr.bf16.mxu0 0
  %615 = vmatpush1.bf16.msra.mxu0 0
  %616 = vmatprep.subr.bf16.mxu0 0
  %617 = vmatpush1.bf16.msra.mxu0 0
  %618 = vmatprep.subr.bf16.mxu0 0
  %619 = vmatpush1.bf16.msra.mxu0 0
  %620 = vmatprep.subr.bf16.mxu0 0
  %621 = vmatpush1.bf16.msra.mxu0 0
  %622 = vmatprep.subr.bf16.mxu0 0
  %623 = vmatpush1.bf16.msra.mxu0 0
  %624 = vmatprep.subr.bf16.mxu0 0
  %625 = vmatpush1.bf16.msra.mxu0 0
  %626 = vmatprep.subr.bf16.mxu0 0
  %627 = vmatpush1.bf16.msra.mxu0 0
  %628 = vmatprep.subr.bf16.mxu0 0
  %629 = vmatpush1.bf16.msra.mxu0 %v612
  %630 = vmatprep.subr.bf16.mxu0 0
  %631 = vmatpush2.bf16.msra.mxu0 0
  %632 = vmatprep.subr.bf16.mxu0 0
  %633 = vmatpush2.bf16.msra.mxu0 0
  %634 = vmatprep.subr.bf16.mxu0 0
  %635 = vmatpush2.bf16.msra.mxu0 0
  %636 = vmatprep.subr.bf16.mxu0 0
  %637 = vmatpush2.bf16.msra.mxu0 0
  %638 = vmatprep.subr.bf16.mxu0 0
  %639 = vmatpush2.bf16.msra.mxu0 0
  %640 = vmatprep.subr.bf16.mxu0 0
  %641 = vmatpush2.bf16.msra.mxu0 0
  %642 = vmatprep.subr.bf16.mxu0 0
  %643 = vmatpush2.bf16.msra.mxu0 0
  %644 = vmatprep.subr.bf16.mxu0 0
  %645 = vmatpush2.bf16.msra.mxu0 0
  %646 = vmatprep.mubr.bf16.mxu0 0
  %647 = vmatmul.mubr.bf16.gmra.mxu0 %v609
  %v648 = vpop.f32.mrf.mxu0
  %v649 = vadd.f32 0.0, %v648
  %v650 = vpop.f32.mrf.mxu0
  %v651 = vpop.f32.mrf.mxu0
  %v652 = vpop.f32.mrf.mxu0
  %653 = vdwg.mxu0
  %v654 = vadd.f32 %v604, %v649
  %v655 = vpack.c.bf16 %v431, %v431
  %s656 = scalar_lea.vmem %s7, 12
  %v657 = vld [vmem:[%s656] sm:$0xf]
  %v659 = vsel %vm452, %v655, 0
  %v662 = vsel %vm456, %v657, 0
  %664 = vmatprep.subr.bf16.mxu0 0
  %665 = vmatpush1.bf16.msra.mxu0 0
  %666 = vmatprep.subr.bf16.mxu0 0
  %667 = vmatpush1.bf16.msra.mxu0 0
  %668 = vmatprep.subr.bf16.mxu0 0
  %669 = vmatpush1.bf16.msra.mxu0 0
  %670 = vmatprep.subr.bf16.mxu0 0
  %671 = vmatpush1.bf16.msra.mxu0 0
  %672 = vmatprep.subr.bf16.mxu0 0
  %673 = vmatpush1.bf16.msra.mxu0 0
  %674 = vmatprep.subr.bf16.mxu0 0
  %675 = vmatpush1.bf16.msra.mxu0 0
  %676 = vmatprep.subr.bf16.mxu0 0
  %677 = vmatpush1.bf16.msra.mxu0 0
  %678 = vmatprep.subr.bf16.mxu0 0
  %679 = vmatpush1.bf16.msra.mxu0 %v662
  %680 = vmatprep.subr.bf16.mxu0 0
  %681 = vmatpush2.bf16.msra.mxu0 0
  %682 = vmatprep.subr.bf16.mxu0 0
  %683 = vmatpush2.bf16.msra.mxu0 0
  %684 = vmatprep.subr.bf16.mxu0 0
  %685 = vmatpush2.bf16.msra.mxu0 0
  %686 = vmatprep.subr.bf16.mxu0 0
  %687 = vmatpush2.bf16.msra.mxu0 0
  %688 = vmatprep.subr.bf16.mxu0 0
  %689 = vmatpush2.bf16.msra.mxu0 0
  %690 = vmatprep.subr.bf16.mxu0 0
  %691 = vmatpush2.bf16.msra.mxu0 0
  %692 = vmatprep.subr.bf16.mxu0 0
  %693 = vmatpush2.bf16.msra.mxu0 0
  %694 = vmatprep.subr.bf16.mxu0 0
  %695 = vmatpush2.bf16.msra.mxu0 0
  %696 = vmatprep.mubr.bf16.mxu0 0
  %697 = vmatmul.mubr.bf16.gmra.mxu0 %v659
  %v698 = vpop.f32.mrf.mxu0
  %v699 = vadd.f32 0.0, %v698
  %v700 = vpop.f32.mrf.mxu0
  %v701 = vpop.f32.mrf.mxu0
  %v702 = vpop.f32.mrf.mxu0
  %703 = vdwg.mxu0
  %v704 = vadd.f32 %v654, %v699
  %v705 = vpack.c.bf16 %v432, %v432
  %s706 = scalar_lea.vmem %s7, 16
  %v707 = vld [vmem:[%s706] sm:$0xf]
  %v709 = vsel %vm452, %v705, 0
  %v712 = vsel %vm456, %v707, 0
  %714 = vmatprep.subr.bf16.mxu0 0
  %715 = vmatpush1.bf16.msra.mxu0 0
  %716 = vmatprep.subr.bf16.mxu0 0
  %717 = vmatpush1.bf16.msra.mxu0 0
  %718 = vmatprep.subr.bf16.mxu0 0
  %719 = vmatpush1.bf16.msra.mxu0 0
  %720 = vmatprep.subr.bf16.mxu0 0
  %721 = vmatpush1.bf16.msra.mxu0 0
  %722 = vmatprep.subr.bf16.mxu0 0
  %723 = vmatpush1.bf16.msra.mxu0 0
  %724 = vmatprep.subr.bf16.mxu0 0
  %725 = vmatpush1.bf16.msra.mxu0 0
  %726 = vmatprep.subr.bf16.mxu0 0
  %727 = vmatpush1.bf16.msra.mxu0 0
  %728 = vmatprep.subr.bf16.mxu0 0
  %729 = vmatpush1.bf16.msra.mxu0 %v712
  %730 = vmatprep.subr.bf16.mxu0 0
  %731 = vmatpush2.bf16.msra.mxu0 0
  %732 = vmatprep.subr.bf16.mxu0 0
  %733 = vmatpush2.bf16.msra.mxu0 0
  %734 = vmatprep.subr.bf16.mxu0 0
  %735 = vmatpush2.bf16.msra.mxu0 0
  %736 = vmatprep.subr.bf16.mxu0 0
  %737 = vmatpush2.bf16.msra.mxu0 0
  %738 = vmatprep.subr.bf16.mxu0 0
  %739 = vmatpush2.bf16.msra.mxu0 0
  %740 = vmatprep.subr.bf16.mxu0 0
  %741 = vmatpush2.bf16.msra.mxu0 0
  %742 = vmatprep.subr.bf16.mxu0 0
  %743 = vmatpush2.bf16.msra.mxu0 0
  %744 = vmatprep.subr.bf16.mxu0 0
  %745 = vmatpush2.bf16.msra.mxu0 0
  %746 = vmatprep.mubr.bf16.mxu0 0
  %747 = vmatmul.mubr.bf16.gmra.mxu0 %v709
  %v748 = vpop.f32.mrf.mxu0
  %v749 = vadd.f32 0.0, %v748
  %v750 = vpop.f32.mrf.mxu0
  %v751 = vpop.f32.mrf.mxu0
  %v752 = vpop.f32.mrf.mxu0
  %753 = vdwg.mxu0
  %v754 = vadd.f32 %v704, %v749
  %v755 = vpack.c.bf16 %v433, %v433
  %s756 = scalar_lea.vmem %s7, 20
  %v757 = vld [vmem:[%s756] sm:$0xf]
  %v759 = vsel %vm452, %v755, 0
  %v762 = vsel %vm456, %v757, 0
  %764 = vmatprep.subr.bf16.mxu0 0
  %765 = vmatpush1.bf16.msra.mxu0 0
  %766 = vmatprep.subr.bf16.mxu0 0
  %767 = vmatpush1.bf16.msra.mxu0 0
  %768 = vmatprep.subr.bf16.mxu0 0
  %769 = vmatpush1.bf16.msra.mxu0 0
  %770 = vmatprep.subr.bf16.mxu0 0
  %771 = vmatpush1.bf16.msra.mxu0 0
  %772 = vmatprep.subr.bf16.mxu0 0
  %773 = vmatpush1.bf16.msra.mxu0 0
  %774 = vmatprep.subr.bf16.mxu0 0
  %775 = vmatpush1.bf16.msra.mxu0 0
  %776 = vmatprep.subr.bf16.mxu0 0
  %777 = vmatpush1.bf16.msra.mxu0 0
  %778 = vmatprep.subr.bf16.mxu0 0
  %779 = vmatpush1.bf16.msra.mxu0 %v762
  %780 = vmatprep.subr.bf16.mxu0 0
  %781 = vmatpush2.bf16.msra.mxu0 0
  %782 = vmatprep.subr.bf16.mxu0 0
  %783 = vmatpush2.bf16.msra.mxu0 0
  %784 = vmatprep.subr.bf16.mxu0 0
  %785 = vmatpush2.bf16.msra.mxu0 0
  %786 = vmatprep.subr.bf16.mxu0 0
  %787 = vmatpush2.bf16.msra.mxu0 0
  %788 = vmatprep.subr.bf16.mxu0 0
  %789 = vmatpush2.bf16.msra.mxu0 0
  %790 = vmatprep.subr.bf16.mxu0 0
  %791 = vmatpush2.bf16.msra.mxu0 0
  %792 = vmatprep.subr.bf16.mxu0 0
  %793 = vmatpush2.bf16.msra.mxu0 0
  %794 = vmatprep.subr.bf16.mxu0 0
  %795 = vmatpush2.bf16.msra.mxu0 0
  %796 = vmatprep.mubr.bf16.mxu0 0
  %797 = vmatmul.mubr.bf16.gmra.mxu0 %v759
  %v798 = vpop.f32.mrf.mxu0
  %v799 = vadd.f32 0.0, %v798
  %v800 = vpop.f32.mrf.mxu0
  %v801 = vpop.f32.mrf.mxu0
  %v802 = vpop.f32.mrf.mxu0
  %803 = vdwg.mxu0
  %v804 = vadd.f32 %v754, %v799
  %v805 = vpack.c.bf16 %v434, %v434
  %s806 = scalar_lea.vmem %s7, 24
  %v807 = vld [vmem:[%s806] sm:$0xf]
  %v809 = vsel %vm452, %v805, 0
  %v812 = vsel %vm456, %v807, 0
  %814 = vmatprep.subr.bf16.mxu0 0
  %815 = vmatpush1.bf16.msra.mxu0 0
  %816 = vmatprep.subr.bf16.mxu0 0
  %817 = vmatpush1.bf16.msra.mxu0 0
  %818 = vmatprep.subr.bf16.mxu0 0
  %819 = vmatpush1.bf16.msra.mxu0 0
  %820 = vmatprep.subr.bf16.mxu0 0
  %821 = vmatpush1.bf16.msra.mxu0 0
  %822 = vmatprep.subr.bf16.mxu0 0
  %823 = vmatpush1.bf16.msra.mxu0 0
  %824 = vmatprep.subr.bf16.mxu0 0
  %825 = vmatpush1.bf16.msra.mxu0 0
  %826 = vmatprep.subr.bf16.mxu0 0
  %827 = vmatpush1.bf16.msra.mxu0 0
  %828 = vmatprep.subr.bf16.mxu0 0
  %829 = vmatpush1.bf16.msra.mxu0 %v812
  %830 = vmatprep.subr.bf16.mxu0 0
  %831 = vmatpush2.bf16.msra.mxu0 0
  %832 = vmatprep.subr.bf16.mxu0 0
  %833 = vmatpush2.bf16.msra.mxu0 0
  %834 = vmatprep.subr.bf16.mxu0 0
  %835 = vmatpush2.bf16.msra.mxu0 0
  %836 = vmatprep.subr.bf16.mxu0 0
  %837 = vmatpush2.bf16.msra.mxu0 0
  %838 = vmatprep.subr.bf16.mxu0 0
  %839 = vmatpush2.bf16.msra.mxu0 0
  %840 = vmatprep.subr.bf16.mxu0 0
  %841 = vmatpush2.bf16.msra.mxu0 0
  %842 = vmatprep.subr.bf16.mxu0 0
  %843 = vmatpush2.bf16.msra.mxu0 0
  %844 = vmatprep.subr.bf16.mxu0 0
  %845 = vmatpush2.bf16.msra.mxu0 0
  %846 = vmatprep.mubr.bf16.mxu0 0
  %847 = vmatmul.mubr.bf16.gmra.mxu0 %v809
  %v848 = vpop.f32.mrf.mxu0
  %v849 = vadd.f32 0.0, %v848
  %v850 = vpop.f32.mrf.mxu0
  %v851 = vpop.f32.mrf.mxu0
  %v852 = vpop.f32.mrf.mxu0
  %853 = vdwg.mxu0
  %v854 = vadd.f32 %v804, %v849
  %v855 = vpack.c.bf16 %v435, %v435
  %s856 = scalar_lea.vmem %s7, 28
  %v857 = vld [vmem:[%s856] sm:$0xf]
  %v859 = vsel %vm452, %v855, 0
  %v862 = vsel %vm456, %v857, 0
  %864 = vmatprep.subr.bf16.mxu0 0
  %865 = vmatpush1.bf16.msra.mxu0 0
  %866 = vmatprep.subr.bf16.mxu0 0
  %867 = vmatpush1.bf16.msra.mxu0 0
  %868 = vmatprep.subr.bf16.mxu0 0
  %869 = vmatpush1.bf16.msra.mxu0 0
  %870 = vmatprep.subr.bf16.mxu0 0
  %871 = vmatpush1.bf16.msra.mxu0 0
  %872 = vmatprep.subr.bf16.mxu0 0
  %873 = vmatpush1.bf16.msra.mxu0 0
  %874 = vmatprep.subr.bf16.mxu0 0
  %875 = vmatpush1.bf16.msra.mxu0 0
  %876 = vmatprep.subr.bf16.mxu0 0
  %877 = vmatpush1.bf16.msra.mxu0 0
  %878 = vmatprep.subr.bf16.mxu0 0
  %879 = vmatpush1.bf16.msra.mxu0 %v862
  %880 = vmatprep.subr.bf16.mxu0 0
  %881 = vmatpush2.bf16.msra.mxu0 0
  %882 = vmatprep.subr.bf16.mxu0 0
  %883 = vmatpush2.bf16.msra.mxu0 0
  %884 = vmatprep.subr.bf16.mxu0 0
  %885 = vmatpush2.bf16.msra.mxu0 0
  %886 = vmatprep.subr.bf16.mxu0 0
  %887 = vmatpush2.bf16.msra.mxu0 0
  %888 = vmatprep.subr.bf16.mxu0 0
  %889 = vmatpush2.bf16.msra.mxu0 0
  %890 = vmatprep.subr.bf16.mxu0 0
  %891 = vmatpush2.bf16.msra.mxu0 0
  %892 = vmatprep.subr.bf16.mxu0 0
  %893 = vmatpush2.bf16.msra.mxu0 0
  %894 = vmatprep.subr.bf16.mxu0 0
  %895 = vmatpush2.bf16.msra.mxu0 0
  %896 = vmatprep.mubr.bf16.mxu0 0
  %897 = vmatmul.mubr.bf16.gmra.mxu0 %v859
  %v898 = vpop.f32.mrf.mxu0
  %v899 = vadd.f32 0.0, %v898
  %v900 = vpop.f32.mrf.mxu0
  %v901 = vpop.f32.mrf.mxu0
  %v902 = vpop.f32.mrf.mxu0
  %903 = vdwg.mxu0
  %v904 = vadd.f32 %v854, %v899
  %v905 = vpack.c.bf16 %v436, %v436
  %s906 = scalar_lea.vmem %s7, 32
  %v907 = vld [vmem:[%s906] sm:$0xf]
  %v909 = vsel %vm452, %v905, 0
  %v912 = vsel %vm456, %v907, 0
  %914 = vmatprep.subr.bf16.mxu0 0
  %915 = vmatpush1.bf16.msra.mxu0 0
  %916 = vmatprep.subr.bf16.mxu0 0
  %917 = vmatpush1.bf16.msra.mxu0 0
  %918 = vmatprep.subr.bf16.mxu0 0
  %919 = vmatpush1.bf16.msra.mxu0 0
  %920 = vmatprep.subr.bf16.mxu0 0
  %921 = vmatpush1.bf16.msra.mxu0 0
  %922 = vmatprep.subr.bf16.mxu0 0
  %923 = vmatpush1.bf16.msra.mxu0 0
  %924 = vmatprep.subr.bf16.mxu0 0
  %925 = vmatpush1.bf16.msra.mxu0 0
  %926 = vmatprep.subr.bf16.mxu0 0
  %927 = vmatpush1.bf16.msra.mxu0 0
  %928 = vmatprep.subr.bf16.mxu0 0
  %929 = vmatpush1.bf16.msra.mxu0 %v912
  %930 = vmatprep.subr.bf16.mxu0 0
  %931 = vmatpush2.bf16.msra.mxu0 0
  %932 = vmatprep.subr.bf16.mxu0 0
  %933 = vmatpush2.bf16.msra.mxu0 0
  %934 = vmatprep.subr.bf16.mxu0 0
  %935 = vmatpush2.bf16.msra.mxu0 0
  %936 = vmatprep.subr.bf16.mxu0 0
  %937 = vmatpush2.bf16.msra.mxu0 0
  %938 = vmatprep.subr.bf16.mxu0 0
  %939 = vmatpush2.bf16.msra.mxu0 0
  %940 = vmatprep.subr.bf16.mxu0 0
  %941 = vmatpush2.bf16.msra.mxu0 0
  %942 = vmatprep.subr.bf16.mxu0 0
  %943 = vmatpush2.bf16.msra.mxu0 0
  %944 = vmatprep.subr.bf16.mxu0 0
  %945 = vmatpush2.bf16.msra.mxu0 0
  %946 = vmatprep.mubr.bf16.mxu0 0
  %947 = vmatmul.mubr.bf16.gmra.mxu0 %v909
  %v948 = vpop.f32.mrf.mxu0
  %v949 = vadd.f32 0.0, %v948
  %v950 = vpop.f32.mrf.mxu0
  %v951 = vpop.f32.mrf.mxu0
  %v952 = vpop.f32.mrf.mxu0
  %953 = vdwg.mxu0
  %v954 = vadd.f32 %v904, %v949
  %v955 = vpack.c.bf16 %v437, %v437
  %s956 = scalar_lea.vmem %s7, 36
  %v957 = vld [vmem:[%s956] sm:$0xf]
  %v959 = vsel %vm452, %v955, 0
  %v962 = vsel %vm456, %v957, 0
  %964 = vmatprep.subr.bf16.mxu0 0
  %965 = vmatpush1.bf16.msra.mxu0 0
  %966 = vmatprep.subr.bf16.mxu0 0
  %967 = vmatpush1.bf16.msra.mxu0 0
  %968 = vmatprep.subr.bf16.mxu0 0
  %969 = vmatpush1.bf16.msra.mxu0 0
  %970 = vmatprep.subr.bf16.mxu0 0
  %971 = vmatpush1.bf16.msra.mxu0 0
  %972 = vmatprep.subr.bf16.mxu0 0
  %973 = vmatpush1.bf16.msra.mxu0 0
  %974 = vmatprep.subr.bf16.mxu0 0
  %975 = vmatpush1.bf16.msra.mxu0 0
  %976 = vmatprep.subr.bf16.mxu0 0
  %977 = vmatpush1.bf16.msra.mxu0 0
  %978 = vmatprep.subr.bf16.mxu0 0
  %979 = vmatpush1.bf16.msra.mxu0 %v962
  %980 = vmatprep.subr.bf16.mxu0 0
  %981 = vmatpush2.bf16.msra.mxu0 0
  %982 = vmatprep.subr.bf16.mxu0 0
  %983 = vmatpush2.bf16.msra.mxu0 0
  %984 = vmatprep.subr.bf16.mxu0 0
  %985 = vmatpush2.bf16.msra.mxu0 0
  %986 = vmatprep.subr.bf16.mxu0 0
  %987 = vmatpush2.bf16.msra.mxu0 0
  %988 = vmatprep.subr.bf16.mxu0 0
  %989 = vmatpush2.bf16.msra.mxu0 0
  %990 = vmatprep.subr.bf16.mxu0 0
  %991 = vmatpush2.bf16.msra.mxu0 0
  %992 = vmatprep.subr.bf16.mxu0 0
  %993 = vmatpush2.bf16.msra.mxu0 0
  %994 = vmatprep.subr.bf16.mxu0 0
  %995 = vmatpush2.bf16.msra.mxu0 0
  %996 = vmatprep.mubr.bf16.mxu0 0
  %997 = vmatmul.mubr.bf16.gmra.mxu0 %v959
  %v998 = vpop.f32.mrf.mxu0
  %v999 = vadd.f32 0.0, %v998
  %v1000 = vpop.f32.mrf.mxu0
  %v1001 = vpop.f32.mrf.mxu0
  %v1002 = vpop.f32.mrf.mxu0
  %1003 = vdwg.mxu0
  %v1004 = vadd.f32 %v954, %v999
  %v1005 = vpack.c.bf16 %v438, %v438
  %s1006 = scalar_lea.vmem %s7, 40
  %v1007 = vld [vmem:[%s1006] sm:$0xf]
  %v1009 = vsel %vm452, %v1005, 0
  %v1012 = vsel %vm456, %v1007, 0
  %1014 = vmatprep.subr.bf16.mxu0 0
  %1015 = vmatpush1.bf16.msra.mxu0 0
  %1016 = vmatprep.subr.bf16.mxu0 0
  %1017 = vmatpush1.bf16.msra.mxu0 0
  %1018 = vmatprep.subr.bf16.mxu0 0
  %1019 = vmatpush1.bf16.msra.mxu0 0
  %1020 = vmatprep.subr.bf16.mxu0 0
  %1021 = vmatpush1.bf16.msra.mxu0 0
  %1022 = vmatprep.subr.bf16.mxu0 0
  %1023 = vmatpush1.bf16.msra.mxu0 0
  %1024 = vmatprep.subr.bf16.mxu0 0
  %1025 = vmatpush1.bf16.msra.mxu0 0
  %1026 = vmatprep.subr.bf16.mxu0 0
  %1027 = vmatpush1.bf16.msra.mxu0 0
  %1028 = vmatprep.subr.bf16.mxu0 0
  %1029 = vmatpush1.bf16.msra.mxu0 %v1012
  %1030 = vmatprep.subr.bf16.mxu0 0
  %1031 = vmatpush2.bf16.msra.mxu0 0
  %1032 = vmatprep.subr.bf16.mxu0 0
  %1033 = vmatpush2.bf16.msra.mxu0 0
  %1034 = vmatprep.subr.bf16.mxu0 0
  %1035 = vmatpush2.bf16.msra.mxu0 0
  %1036 = vmatprep.subr.bf16.mxu0 0
  %1037 = vmatpush2.bf16.msra.mxu0 0
  %1038 = vmatprep.subr.bf16.mxu0 0
  %1039 = vmatpush2.bf16.msra.mxu0 0
  %1040 = vmatprep.subr.bf16.mxu0 0
  %1041 = vmatpush2.bf16.msra.mxu0 0
  %1042 = vmatprep.subr.bf16.mxu0 0
  %1043 = vmatpush2.bf16.msra.mxu0 0
  %1044 = vmatprep.subr.bf16.mxu0 0
  %1045 = vmatpush2.bf16.msra.mxu0 0
  %1046 = vmatprep.mubr.bf16.mxu0 0
  %1047 = vmatmul.mubr.bf16.gmra.mxu0 %v1009
  %v1048 = vpop.f32.mrf.mxu0
  %v1049 = vadd.f32 0.0, %v1048
  %v1050 = vpop.f32.mrf.mxu0
  %v1051 = vpop.f32.mrf.mxu0
  %v1052 = vpop.f32.mrf.mxu0
  %1053 = vdwg.mxu0
  %v1054 = vadd.f32 %v1004, %v1049
  %v1055 = vpack.c.bf16 %v439, %v439
  %s1056 = scalar_lea.vmem %s7, 44
  %v1057 = vld [vmem:[%s1056] sm:$0xf]
  %v1059 = vsel %vm452, %v1055, 0
  %v1062 = vsel %vm456, %v1057, 0
  %1064 = vmatprep.subr.bf16.mxu0 0
  %1065 = vmatpush1.bf16.msra.mxu0 0
  %1066 = vmatprep.subr.bf16.mxu0 0
  %1067 = vmatpush1.bf16.msra.mxu0 0
  %1068 = vmatprep.subr.bf16.mxu0 0
  %1069 = vmatpush1.bf16.msra.mxu0 0
  %1070 = vmatprep.subr.bf16.mxu0 0
  %1071 = vmatpush1.bf16.msra.mxu0 0
  %1072 = vmatprep.subr.bf16.mxu0 0
  %1073 = vmatpush1.bf16.msra.mxu0 0
  %1074 = vmatprep.subr.bf16.mxu0 0
  %1075 = vmatpush1.bf16.msra.mxu0 0
  %1076 = vmatprep.subr.bf16.mxu0 0
  %1077 = vmatpush1.bf16.msra.mxu0 0
  %1078 = vmatprep.subr.bf16.mxu0 0
  %1079 = vmatpush1.bf16.msra.mxu0 %v1062
  %1080 = vmatprep.subr.bf16.mxu0 0
  %1081 = vmatpush2.bf16.msra.mxu0 0
  %1082 = vmatprep.subr.bf16.mxu0 0
  %1083 = vmatpush2.bf16.msra.mxu0 0
  %1084 = vmatprep.subr.bf16.mxu0 0
  %1085 = vmatpush2.bf16.msra.mxu0 0
  %1086 = vmatprep.subr.bf16.mxu0 0
  %1087 = vmatpush2.bf16.msra.mxu0 0
  %1088 = vmatprep.subr.bf16.mxu0 0
  %1089 = vmatpush2.bf16.msra.mxu0 0
  %1090 = vmatprep.subr.bf16.mxu0 0
  %1091 = vmatpush2.bf16.msra.mxu0 0
  %1092 = vmatprep.subr.bf16.mxu0 0
  %1093 = vmatpush2.bf16.msra.mxu0 0
  %1094 = vmatprep.subr.bf16.mxu0 0
  %1095 = vmatpush2.bf16.msra.mxu0 0
  %1096 = vmatprep.mubr.bf16.mxu0 0
  %1097 = vmatmul.mubr.bf16.gmra.mxu0 %v1059
  %v1098 = vpop.f32.mrf.mxu0
  %v1099 = vadd.f32 0.0, %v1098
  %v1100 = vpop.f32.mrf.mxu0
  %v1101 = vpop.f32.mrf.mxu0
  %v1102 = vpop.f32.mrf.mxu0
  %1103 = vdwg.mxu0
  %v1104 = vadd.f32 %v1054, %v1099
  %v1105 = vpack.c.bf16 %v440, %v440
  %s1106 = scalar_lea.vmem %s7, 48
  %v1107 = vld [vmem:[%s1106] sm:$0xf]
  %v1109 = vsel %vm452, %v1105, 0
  %v1112 = vsel %vm456, %v1107, 0
  %1114 = vmatprep.subr.bf16.mxu0 0
  %1115 = vmatpush1.bf16.msra.mxu0 0
  %1116 = vmatprep.subr.bf16.mxu0 0
  %1117 = vmatpush1.bf16.msra.mxu0 0
  %1118 = vmatprep.subr.bf16.mxu0 0
  %1119 = vmatpush1.bf16.msra.mxu0 0
  %1120 = vmatprep.subr.bf16.mxu0 0
  %1121 = vmatpush1.bf16.msra.mxu0 0
  %1122 = vmatprep.subr.bf16.mxu0 0
  %1123 = vmatpush1.bf16.msra.mxu0 0
  %1124 = vmatprep.subr.bf16.mxu0 0
  %1125 = vmatpush1.bf16.msra.mxu0 0
  %1126 = vmatprep.subr.bf16.mxu0 0
  %1127 = vmatpush1.bf16.msra.mxu0 0
  %1128 = vmatprep.subr.bf16.mxu0 0
  %1129 = vmatpush1.bf16.msra.mxu0 %v1112
  %1130 = vmatprep.subr.bf16.mxu0 0
  %1131 = vmatpush2.bf16.msra.mxu0 0
  %1132 = vmatprep.subr.bf16.mxu0 0
  %1133 = vmatpush2.bf16.msra.mxu0 0
  %1134 = vmatprep.subr.bf16.mxu0 0
  %1135 = vmatpush2.bf16.msra.mxu0 0
  %1136 = vmatprep.subr.bf16.mxu0 0
  %1137 = vmatpush2.bf16.msra.mxu0 0
  %1138 = vmatprep.subr.bf16.mxu0 0
  %1139 = vmatpush2.bf16.msra.mxu0 0
  %1140 = vmatprep.subr.bf16.mxu0 0
  %1141 = vmatpush2.bf16.msra.mxu0 0
  %1142 = vmatprep.subr.bf16.mxu0 0
  %1143 = vmatpush2.bf16.msra.mxu0 0
  %1144 = vmatprep.subr.bf16.mxu0 0
  %1145 = vmatpush2.bf16.msra.mxu0 0
  %1146 = vmatprep.mubr.bf16.mxu0 0
  %1147 = vmatmul.mubr.bf16.gmra.mxu0 %v1109
  %v1148 = vpop.f32.mrf.mxu0
  %v1149 = vadd.f32 0.0, %v1148
  %v1150 = vpop.f32.mrf.mxu0
  %v1151 = vpop.f32.mrf.mxu0
  %v1152 = vpop.f32.mrf.mxu0
  %1153 = vdwg.mxu0
  %v1154 = vadd.f32 %v1104, %v1149
  %v1155 = vpack.c.bf16 %v441, %v441
  %s1156 = scalar_lea.vmem %s7, 52
  %v1157 = vld [vmem:[%s1156] sm:$0xf]
  %v1159 = vsel %vm452, %v1155, 0
  %v1162 = vsel %vm456, %v1157, 0
  %1164 = vmatprep.subr.bf16.mxu0 0
  %1165 = vmatpush1.bf16.msra.mxu0 0
  %1166 = vmatprep.subr.bf16.mxu0 0
  %1167 = vmatpush1.bf16.msra.mxu0 0
  %1168 = vmatprep.subr.bf16.mxu0 0
  %1169 = vmatpush1.bf16.msra.mxu0 0
  %1170 = vmatprep.subr.bf16.mxu0 0
  %1171 = vmatpush1.bf16.msra.mxu0 0
  %1172 = vmatprep.subr.bf16.mxu0 0
  %1173 = vmatpush1.bf16.msra.mxu0 0
  %1174 = vmatprep.subr.bf16.mxu0 0
  %1175 = vmatpush1.bf16.msra.mxu0 0
  %1176 = vmatprep.subr.bf16.mxu0 0
  %1177 = vmatpush1.bf16.msra.mxu0 0
  %1178 = vmatprep.subr.bf16.mxu0 0
  %1179 = vmatpush1.bf16.msra.mxu0 %v1162
  %1180 = vmatprep.subr.bf16.mxu0 0
  %1181 = vmatpush2.bf16.msra.mxu0 0
  %1182 = vmatprep.subr.bf16.mxu0 0
  %1183 = vmatpush2.bf16.msra.mxu0 0
  %1184 = vmatprep.subr.bf16.mxu0 0
  %1185 = vmatpush2.bf16.msra.mxu0 0
  %1186 = vmatprep.subr.bf16.mxu0 0
  %1187 = vmatpush2.bf16.msra.mxu0 0
  %1188 = vmatprep.subr.bf16.mxu0 0
  %1189 = vmatpush2.bf16.msra.mxu0 0
  %1190 = vmatprep.subr.bf16.mxu0 0
  %1191 = vmatpush2.bf16.msra.mxu0 0
  %1192 = vmatprep.subr.bf16.mxu0 0
  %1193 = vmatpush2.bf16.msra.mxu0 0
  %1194 = vmatprep.subr.bf16.mxu0 0
  %1195 = vmatpush2.bf16.msra.mxu0 0
  %1196 = vmatprep.mubr.bf16.mxu0 0
  %1197 = vmatmul.mubr.bf16.gmra.mxu0 %v1159
  %v1198 = vpop.f32.mrf.mxu0
  %v1199 = vadd.f32 0.0, %v1198
  %v1200 = vpop.f32.mrf.mxu0
  %v1201 = vpop.f32.mrf.mxu0
  %v1202 = vpop.f32.mrf.mxu0
  %1203 = vdwg.mxu0
  %v1204 = vadd.f32 %v1154, %v1199
  %v1205 = vpack.c.bf16 %v442, %v442
  %s1206 = scalar_lea.vmem %s7, 56
  %v1207 = vld [vmem:[%s1206] sm:$0xf]
  %v1209 = vsel %vm452, %v1205, 0
  %v1212 = vsel %vm456, %v1207, 0
  %1214 = vmatprep.subr.bf16.mxu0 0
  %1215 = vmatpush1.bf16.msra.mxu0 0
  %1216 = vmatprep.subr.bf16.mxu0 0
  %1217 = vmatpush1.bf16.msra.mxu0 0
  %1218 = vmatprep.subr.bf16.mxu0 0
  %1219 = vmatpush1.bf16.msra.mxu0 0
  %1220 = vmatprep.subr.bf16.mxu0 0
  %1221 = vmatpush1.bf16.msra.mxu0 0
  %1222 = vmatprep.subr.bf16.mxu0 0
  %1223 = vmatpush1.bf16.msra.mxu0 0
  %1224 = vmatprep.subr.bf16.mxu0 0
  %1225 = vmatpush1.bf16.msra.mxu0 0
  %1226 = vmatprep.subr.bf16.mxu0 0
  %1227 = vmatpush1.bf16.msra.mxu0 0
  %1228 = vmatprep.subr.bf16.mxu0 0
  %1229 = vmatpush1.bf16.msra.mxu0 %v1212
  %1230 = vmatprep.subr.bf16.mxu0 0
  %1231 = vmatpush2.bf16.msra.mxu0 0
  %1232 = vmatprep.subr.bf16.mxu0 0
  %1233 = vmatpush2.bf16.msra.mxu0 0
  %1234 = vmatprep.subr.bf16.mxu0 0
  %1235 = vmatpush2.bf16.msra.mxu0 0
  %1236 = vmatprep.subr.bf16.mxu0 0
  %1237 = vmatpush2.bf16.msra.mxu0 0
  %1238 = vmatprep.subr.bf16.mxu0 0
  %1239 = vmatpush2.bf16.msra.mxu0 0
  %1240 = vmatprep.subr.bf16.mxu0 0
  %1241 = vmatpush2.bf16.msra.mxu0 0
  %1242 = vmatprep.subr.bf16.mxu0 0
  %1243 = vmatpush2.bf16.msra.mxu0 0
  %1244 = vmatprep.subr.bf16.mxu0 0
  %1245 = vmatpush2.bf16.msra.mxu0 0
  %1246 = vmatprep.mubr.bf16.mxu0 0
  %1247 = vmatmul.mubr.bf16.gmra.mxu0 %v1209
  %v1248 = vpop.f32.mrf.mxu0
  %v1249 = vadd.f32 0.0, %v1248
  %v1250 = vpop.f32.mrf.mxu0
  %v1251 = vpop.f32.mrf.mxu0
  %v1252 = vpop.f32.mrf.mxu0
  %1253 = vdwg.mxu0
  %v1254 = vadd.f32 %v1204, %v1249
  %v1255 = vpack.c.bf16 %v443, %v443
  %s1256 = scalar_lea.vmem %s7, 60
  %v1257 = vld [vmem:[%s1256] sm:$0xf]
  %v1259 = vsel %vm452, %v1255, 0
  %v1262 = vsel %vm456, %v1257, 0
  %1264 = vmatprep.subr.bf16.mxu0 0
  %1265 = vmatpush1.bf16.msra.mxu0 0
  %1266 = vmatprep.subr.bf16.mxu0 0
  %1267 = vmatpush1.bf16.msra.mxu0 0
  %1268 = vmatprep.subr.bf16.mxu0 0
  %1269 = vmatpush1.bf16.msra.mxu0 0
  %1270 = vmatprep.subr.bf16.mxu0 0
  %1271 = vmatpush1.bf16.msra.mxu0 0
  %1272 = vmatprep.subr.bf16.mxu0 0
  %1273 = vmatpush1.bf16.msra.mxu0 0
  %1274 = vmatprep.subr.bf16.mxu0 0
  %1275 = vmatpush1.bf16.msra.mxu0 0
  %1276 = vmatprep.subr.bf16.mxu0 0
  %1277 = vmatpush1.bf16.msra.mxu0 0
  %1278 = vmatprep.subr.bf16.mxu0 0
  %1279 = vmatpush1.bf16.msra.mxu0 %v1262
  %1280 = vmatprep.subr.bf16.mxu0 0
  %1281 = vmatpush2.bf16.msra.mxu0 0
  %1282 = vmatprep.subr.bf16.mxu0 0
  %1283 = vmatpush2.bf16.msra.mxu0 0
  %1284 = vmatprep.subr.bf16.mxu0 0
  %1285 = vmatpush2.bf16.msra.mxu0 0
  %1286 = vmatprep.subr.bf16.mxu0 0
  %1287 = vmatpush2.bf16.msra.mxu0 0
  %1288 = vmatprep.subr.bf16.mxu0 0
  %1289 = vmatpush2.bf16.msra.mxu0 0
  %1290 = vmatprep.subr.bf16.mxu0 0
  %1291 = vmatpush2.bf16.msra.mxu0 0
  %1292 = vmatprep.subr.bf16.mxu0 0
  %1293 = vmatpush2.bf16.msra.mxu0 0
  %1294 = vmatprep.subr.bf16.mxu0 0
  %1295 = vmatpush2.bf16.msra.mxu0 0
  %1296 = vmatprep.mubr.bf16.mxu0 0
  %1297 = vmatmul.mubr.bf16.gmra.mxu0 %v1259
  %v1298 = vpop.f32.mrf.mxu0
  %v1299 = vadd.f32 0.0, %v1298
  %v1300 = vpop.f32.mrf.mxu0
  %v1301 = vpop.f32.mrf.mxu0
  %v1302 = vpop.f32.mrf.mxu0
  %1303 = vdwg.mxu0
  %v1304 = vadd.f32 %v1254, %v1299
  %v1305 = vld [vmem:[%s9] sm:$0x1]
  %v1307 = vlaneseq
  %v1308 = vshrl.u32 %v1307, 7
  %v1309 = vsub.s32 0, %v1308
  %v1310 = vrot.slane %v1305, %v1309
  %v1312 = vadd.f32 %v1304, %v1310
  %v1313 = vlaneseq
  %v1314 = vand.u32 %v1313, 127
  %vm1315 = vcmp.lt.s32.totalorder %v1314, 64
  %vm1316 = vcmp.ge.s32.totalorder %v1314, 96
  %vm1317 = vmor %vm1315, %vm1316
  %v1318 = vxor.u32 %v1312, 2147483648
  %v1319 = vmul.f32 %v1318, 1.442695
  %v1320 = vpow.pop %v1319
  %v1321 = vadd.f32 %v1320, 1.0
  %v1322 = vrcp.pop %v1321
  %v1323 = vmul.f32 1.0, %v1322
  %v1324 = vtanh.pop %v1312
  %v1325 = vsel %vm1317, %v1323, %v1324
  %v1326 = vld [vmem:[%s2] sm:$0xff]
  %1328 = vrot.lane.b32.xlu0 %v1326, 32
  %v1329 = vpop.permute.xlu0 %1328
  %v1331 = vmul.f32 %v1325, %v1329
  %1333 = vrot.lane.b32.xlu0 %v1325, 64
  %v1334 = vpop.permute.xlu0 %1333
  %v1336 = vmul.f32 %v1325, %v1334
  %1338 = vrot.lane.b32.xlu0 %v1336, 32
  %v1339 = vpop.permute.xlu0 %1338
  %v1341 = vadd.f32 %v1331, %v1339
  %v1342 = vtanh.pop %v1341
  %1344 = vrot.lane.b32.xlu0 %v1342, 64
  %v1345 = vpop.permute.xlu0 %1344
  %v1347 = vmul.f32 %v1325, %v1345
  %v1348 = vpack.c.bf16 %v1347, %v1347
  %v1349 = vld [vmem:[%s10] sm:$0xf]
  %v1350 = vld [vmem:[%s10 + $0x4] sm:$0xf]
  %v1351 = vld [vmem:[%s10 + $0x8] sm:$0xf]
  %v1352 = vld [vmem:[%s10 + $0xc] sm:$0xf]
  %v1353 = vld [vmem:[%s11] sm:$0x1]
  %v1355 = vlaneseq
  %v1356 = vshrl.u32 %v1355, 7
  %v1357 = vsub.s32 0, %v1356
  %v1358 = vrot.slane %v1353, %v1357
  %1361 = vrot.lane.b32.xlu0 %v1348, 32
  %v1362 = vpop.permute.xlu0 %1361
  %v1367 = vunpack.c.l.b16 %v1349
  %v1368 = vunpack.c.l.b16 %v1350
  %v1369 = vunpack.c.l.b16 %v1351
  %v1370 = vunpack.c.l.b16 %v1352
  %v1371 = vpack.c.b16 %v1368, %v1367
  %v1372 = vpack.c.b16 %v1370, %v1369
  %v1376 = vsel %vm306, %v1362, 0
  %1378 = vmatprep.subr.bf16.mxu0 0
  %1379 = vmatpush1.bf16.msra.mxu0 0
  %1380 = vmatprep.subr.bf16.mxu0 0
  %1381 = vmatpush1.bf16.msra.mxu0 0
  %1382 = vmatprep.subr.bf16.mxu0 0
  %1383 = vmatpush1.bf16.msra.mxu0 0
  %1384 = vmatprep.subr.bf16.mxu0 0
  %1385 = vmatpush1.bf16.msra.mxu0 0
  %1386 = vmatprep.subr.bf16.mxu0 0
  %1387 = vmatpush1.bf16.msra.mxu0 0
  %1388 = vmatprep.subr.bf16.mxu0 0
  %1389 = vmatpush1.bf16.msra.mxu0 0
  %1390 = vmatprep.subr.bf16.mxu0 0
  %1391 = vmatpush1.bf16.msra.mxu0 %v1372
  %1392 = vmatprep.subr.bf16.mxu0 0
  %1393 = vmatpush1.bf16.msra.mxu0 %v1371
  %1394 = vmatprep.subr.bf16.mxu0 0
  %1395 = vmatpush2.bf16.msra.mxu0 0
  %1396 = vmatprep.subr.bf16.mxu0 0
  %1397 = vmatpush2.bf16.msra.mxu0 0
  %1398 = vmatprep.subr.bf16.mxu0 0
  %1399 = vmatpush2.bf16.msra.mxu0 0
  %1400 = vmatprep.subr.bf16.mxu0 0
  %1401 = vmatpush2.bf16.msra.mxu0 0
  %1402 = vmatprep.subr.bf16.mxu0 0
  %1403 = vmatpush2.bf16.msra.mxu0 0
  %1404 = vmatprep.subr.bf16.mxu0 0
  %1405 = vmatpush2.bf16.msra.mxu0 0
  %1406 = vmatprep.subr.bf16.mxu0 0
  %1407 = vmatpush2.bf16.msra.mxu0 0
  %1408 = vmatprep.subr.bf16.mxu0 0
  %1409 = vmatpush2.bf16.msra.mxu0 0
  %1410 = vmatprep.mubr.bf16.mxu0 0
  %1411 = vmatmul.mubr.bf16.gmra.mxu0 %v1376
  %v1412 = vpop.f32.mrf.mxu0
  %v1413 = vadd.f32 %v1358, %v1412
  %v1414 = vpop.f32.mrf.mxu0
  %v1415 = vpop.f32.mrf.mxu0
  %v1416 = vpop.f32.mrf.mxu0
  %1417 = vdwg.mxu0
  %vm1418 = vcmask 56328
  %v1419 = vsel %vm1418, %v1413, -inf
  %1420 = vmax.xlane.f32.xlu0 %v1419
  %v1421 = vpop.xlane.xlu0 %1420
  %v1422 = vsub.f32 %v1413, %v1421
  %v1423 = vmul.f32 %v1422, 1.442695
  %v1424 = vpow.pop %v1423
  %1426 = vrot.lane.b32.xlu0 %v1424, 127
  %v1427 = vpop.permute.xlu0 %1426
  %vm1429 = vcmask 48128
  %v1430 = vsel %vm1429, %v1427, 0.0
  %1431 = vadd.xlane.f32.xlu0 %v1430
  %v1432 = vpop.xlane.xlu0 %1431
  %v1433 = vrcp.pop %v1432
  %v1434 = vmul.f32 %v1424, %v1433
  %1436 = vrot.lane.b32.xlu0 %v1347, 32
  %v1437 = vpop.permute.xlu0 %1436
  %1440 = vrot.lane.b32.xlu0 %v1434, 63
  %v1441 = vpop.permute.xlu0 %1440
  %1444 = vrot.lane.b32.xlu0 %v1413, 70
  %v1445 = vpop.permute.xlu0 %1444
  %v1447 = vsel %vm306, %v1437, %v1341
  %v1448 = vsel %vm137, %v1447, %v1441
  %vm1449 = vcmask 572416
  %v1450 = vsel %vm1449, %v1448, %v1445
  %vm1451 = vcmask 580608
  %v1452 = vsel %vm1451, %v1450, 0.0
  %1453 = vst [vmem:[%s12] sm:$0xff] %v1452
  // Predicated region
  $region50: #{_lambda_.1} parent=0 // pred_check
    _
  $region51: #{_lambda_.1} parent=0 // pred_check_branch
    %1455 = sbr.rel (0) target = $region53
  $region52: #{_lambda_.1} parent=0 // pred_region
    _
  $region53: #{_lambda_.1} parent=0 // pred_fallthru
    _
  // Predicated region
  $region54: #{_lambda_.1} parent=0 // pred_check
    _
  $region55: #{_lambda_.1} parent=0 // pred_check_branch
    %1457 = sbr.rel (0) target = $region57
  $region56: #{_lambda_.1} parent=0 // pred_region
    _
  $region57: #{_lambda_.1} parent=0 // pred_fallthru
    _

</llo_original>
